<compile_context>
chip_gen: v5e
topology: v5e:2x2
jax: 0.10.0
libtpu: 0.0.40
codegen_flags: <defaults>
</compile_context>

<pallas_src>
import functools

import jax
import jax.numpy as jnp
from jax.experimental import pallas as pl
from jax.experimental.pallas import tpu as pltpu

HIDDEN = 512


def _round_up(x, m):
    return ((x + m - 1) // m) * m


def gaussian_channel_kernel(
    s_ref, a_ref, rep_ref, sel_ref,
    w1_ref, b1_ref, w2_ref, b2_ref, w3_ref, b3_ref, w4_ref, b4_ref,
    g_ref, pred_ref,
    *, g_cols,
):
    # ---- MLP: 3 hidden ReLU layers (512); bf16 operands, f32 accumulation ----
    x = s_ref[...].astype(jnp.bfloat16)                                   # (TB, obs)
    h = jnp.dot(x, w1_ref[...], preferred_element_type=jnp.float32) + b1_ref[...]
    h = jnp.maximum(h, 0.0).astype(jnp.bfloat16)
    h = jnp.dot(h, w2_ref[...], preferred_element_type=jnp.float32) + b2_ref[...]
    h = jnp.maximum(h, 0.0).astype(jnp.bfloat16)
    h = jnp.dot(h, w3_ref[...], preferred_element_type=jnp.float32) + b3_ref[...]
    h = jnp.maximum(h, 0.0).astype(jnp.bfloat16)                          # (TB, 512)

    # ---- merged, lane-padded head: columns = [G | 0 | bias | 0] --------------
    gb = jnp.dot(h, w4_ref[...], preferred_element_type=jnp.float32) + b4_ref[...]
    g = gb[:, :g_cols]            # (TB, G_pad)  lane-tile-aligned static slice
    bias_blk = gb[:, g_cols:]     # (TB, P_pad)  = [bias | zeros], lane-dense

    g_ref[...] = g                # lane-dense store

    # ---- pred = (g * replicate(a)) @ S + bias  (segment-sum, no relayout) ----
    # a_rep[b, o*NA + j] = a[b, j]   via exact 0/1 replication matmul.
    a_rep = jnp.dot(a_ref[...], rep_ref[...], preferred_element_type=jnp.float32)
    ga = g * a_rep
    pred_ref[...] = (
        jnp.dot(ga, sel_ref[...], preferred_element_type=jnp.float32) + bias_blk
    )                             # lane-dense store; cols >= obs_dim are zero


def gaussian_channel_forward(s_t, action_sequence, params, *, obs_dim, N, ac_dim,
                             batch_tile=512):
    """Returns (pred_s_T, G_matrix), matching GaussianChannelModel.forward."""
    B = s_t.shape[0]
    NA = N * ac_dim
    out_g = obs_dim * NA
    G_pad = _round_up(out_g, 128)        # lane-dense G slab width
    P_pad = _round_up(obs_dim, 128)      # lane-dense pred slab width
    head = G_pad + P_pad

    (w1, b1), (w2, b2), (w3, b3), (w4, b4) = params

    # Merged zero-padded head: cols [0:out_g] = G weights, [G_pad:G_pad+obs_dim] = bias weights.
    w4_pad = jnp.zeros((HIDDEN, head), jnp.float32)
    w4_pad = w4_pad.at[:, :out_g].set(w4[:, :out_g])
    w4_pad = w4_pad.at[:, G_pad:G_pad + obs_dim].set(w4[:, out_g:])
    b4_pad = jnp.zeros((1, head), jnp.float32)
    b4_pad = b4_pad.at[:, :out_g].set(b4[:, :out_g])
    b4_pad = b4_pad.at[:, G_pad:G_pad + obs_dim].set(b4[:, out_g:])

    bf = jnp.bfloat16
    w1b, w2b, w3b, w4b_ = (w.astype(bf) for w in (w1, w2, w3, w4_pad))
    b1f, b2f, b3f, b4f = (b.astype(jnp.float32) for b in (b1, b2, b3, b4_pad))
    # TODO(synk): int8 quantization of the 512x512 layers would halve weight DMA
    # again on v5e/v6e (not v7x: no int MXU); omitted to keep accuracy margins.

    # Constant 0/1 matrices (exact; kept f32 so the G.a contraction stays f32-accurate):
    #   rep[j, k] = 1  iff k < out_g and k % NA == j          (replicate a along obs_dim)
    #   sel[k, o] = 1  iff k < out_g, o < obs_dim, k//NA == o (segment-sum back to obs_dim)
    k_idx = jnp.arange(G_pad, dtype=jnp.int32)
    rep = (((k_idx[None, :] % NA) == jnp.arange(NA, dtype=jnp.int32)[:, None])
           & (k_idx[None, :] < out_g)).astype(jnp.float32)            # (NA, G_pad)
    sel = (((k_idx[:, None] // NA) == jnp.arange(P_pad, dtype=jnp.int32)[None, :])
           & (k_idx[:, None] < out_g)).astype(jnp.float32)            # (G_pad, P_pad)

    # ---- batch tiling / padding (sublane-aligned) -----------------------------
    TB = _round_up(min(batch_tile, _round_up(B, 8)), 8)
    B_pad = _round_up(B, TB)
    n_tiles = B_pad // TB
    # v7x has 2 TensorCores: prefer an even tile count when there is more than
    # one tile of work, so dimension_semantics=("parallel",) actually splits.
    if n_tiles > 1 and n_tiles % 2 == 1 and TB % 256 == 0:
        TB //= 2
        B_pad = _round_up(B, TB)
        n_tiles = B_pad // TB

    s = s_t.astype(jnp.float32)
    a_flat = action_sequence.reshape(B, NA).astype(jnp.float32)
    if B_pad != B:
        pad = ((0, B_pad - B), (0, 0))
        s = jnp.pad(s, pad)
        a_flat = jnp.pad(a_flat, pad)

    def row_spec(cols):     # batch-tiled (B_pad, cols) arrays
        return pl.BlockSpec((TB, cols), lambda i: (i, 0))

    def const_spec(shape):  # weights / constants: same block each step -> VMEM-resident
        return pl.BlockSpec(shape, lambda i: (0, 0))

    # Advisory cost estimate so XLA can schedule around the kernel.
    flops = 2 * B_pad * (obs_dim * HIDDEN + 2 * HIDDEN * HIDDEN
                         + HIDDEN * head + NA * G_pad + G_pad * P_pad)
    bytes_accessed = (
        2 * (obs_dim * HIDDEN + 2 * HIDDEN * HIDDEN + HIDDEN * head)   # bf16 weights
        + 4 * (3 * HIDDEN + head)                                      # f32 biases
        + 4 * (NA * G_pad + G_pad * P_pad)                             # rep / sel constants
        + 4 * B_pad * (obs_dim + NA)                                   # inputs
        + 4 * B_pad * head                                             # outputs
    )
    cost = pl.CostEstimate(flops=flops, transcendentals=0,
                           bytes_accessed=bytes_accessed)

    kernel = functools.partial(gaussian_channel_kernel, g_cols=G_pad)

    g_slab, pred_slab = pl.pallas_call(
        kernel,
        out_shape=(
            jax.ShapeDtypeStruct((B_pad, G_pad), jnp.float32),
            jax.ShapeDtypeStruct((B_pad, P_pad), jnp.float32),
        ),
        grid_spec=pltpu.PrefetchScalarGridSpec(
            num_scalar_prefetch=0,
            grid=(n_tiles,),
            in_specs=[
                row_spec(obs_dim),               # s
                row_spec(NA),                    # a (replicated in-kernel)
                const_spec(rep.shape),
                const_spec(sel.shape),
                const_spec(w1b.shape), const_spec(b1f.shape),
                const_spec(w2b.shape), const_spec(b2f.shape),
                const_spec(w3b.shape), const_spec(b3f.shape),
                const_spec(w4b_.shape), const_spec(b4f.shape),
            ],
            out_specs=[
                row_spec(G_pad),
                row_spec(P_pad),
            ],
        ),
        compiler_params=pltpu.CompilerParams(
            dimension_semantics=("parallel",)),
        cost_estimate=cost,
    )(s, a_flat, rep, sel,
      w1b, b1f, w2b, b2f, w3b, b3f, w4b_, b4f)

    pred = pred_slab[:B, :obs_dim]
    G_matrix = g_slab[:B, :out_g].reshape(B, obs_dim, NA)
    # TODO(synk): empowerment() (torch.svd + cvxpy water-filling) and the Adam
    # update() step have no Pallas equivalent; only forward() is implemented.
    return pred, G_matrix


def init_params(key, obs_dim, N, ac_dim, hidden=HIDDEN):
    """Deterministic init matching ptu.build_mlp(obs_dim, obs_dim*(N*ac_dim)+obs_dim,
    n_layers=3, size=512). Weights stored as (in, out) for x @ W + b."""
    out_dim = obs_dim * (N * ac_dim) + obs_dim
    dims = [(obs_dim, hidden), (hidden, hidden), (hidden, hidden), (hidden, out_dim)]
    params = []
    for fan_in, fan_out in dims:
        kw, kb, key = jax.random.split(key, 3)
        bound = 1.0 / jnp.sqrt(fan_in)
        w = jax.random.uniform(kw, (fan_in, fan_out), jnp.float32, -bound, bound)
        b = jax.random.uniform(kb, (1, fan_out), jnp.float32, -bound, bound)
        params.append((w, b))
    return params


def reference_forward(s_t, action_sequence, params, *, obs_dim, N, ac_dim):
    """Pure-JAX reference with the same bf16-operand / f32-accumulate policy."""
    (w1, b1), (w2, b2), (w3, b3), (w4, b4) = params
    bf = jnp.bfloat16

    def lin(x, w, b):
        return jnp.dot(x.astype(bf), w.astype(bf),
                       preferred_element_type=jnp.float32) + b

    h = jnp.maximum(lin(s_t, w1, b1), 0.0)
    h = jnp.maximum(lin(h, w2, b2), 0.0)
    h = jnp.maximum(lin(h, w3, b3), 0.0)
    gb = lin(h, w4, b4)

    B = s_t.shape[0]
    NA = N * ac_dim
    G = gb[:, :obs_dim * NA].reshape(B, obs_dim, NA)
    b = gb[:, obs_dim * NA:]
    a = action_sequence.reshape(B, NA, 1)
    pred = jnp.matmul(G, a)[..., 0] + b
    return pred, G


if __name__ == "__main__":
    obs_dim, ac_dim, N, B = 8, 4, 4, 2

    key = jax.random.PRNGKey(0)
    k_s, k_a, k_p = jax.random.split(key, 3)
    s_t = jax.random.normal(k_s, (B, obs_dim), jnp.float32)
    action_sequence = jax.random.normal(k_a, (B, N, ac_dim), jnp.float32)
    params = init_params(k_p, obs_dim, N, ac_dim)

    fwd = functools.partial(gaussian_channel_forward,
                            obs_dim=obs_dim, N=N, ac_dim=ac_dim)
    pred, G_mat = fwd(s_t, action_sequence, params)
    jax.block_until_ready((pred, G_mat))

    pred_ref, G_ref = reference_forward(
        s_t, action_sequence, params, obs_dim=obs_dim, N=N, ac_dim=ac_dim)

    assert pred.shape == (B, obs_dim)
    assert G_mat.shape == (B, obs_dim, N * ac_dim)
    assert jnp.allclose(pred, pred_ref, atol=5e-3, rtol=5e-3), (
        float(jnp.max(jnp.abs(pred - pred_ref))))
    assert jnp.allclose(G_mat, G_ref, atol=5e-3, rtol=5e-3), (
        float(jnp.max(jnp.abs(G_mat - G_ref))))

    # Also exercise the multi-tile path (batch padding + >1 grid step).
    B2 = 20
    k_s2, k_a2 = jax.random.split(jax.random.PRNGKey(1))
    s2 = jax.random.normal(k_s2, (B2, obs_dim), jnp.float32)
    a2 = jax.random.normal(k_a2, (B2, N, ac_dim), jnp.float32)
    pred2, G2 = gaussian_channel_forward(s2, a2, params, obs_dim=obs_dim,
                                         N=N, ac_dim=ac_dim, batch_tile=8)
    jax.block_until_ready((pred2, G2))
    pred2_ref, G2_ref = reference_forward(
        s2, a2, params, obs_dim=obs_dim, N=N, ac_dim=ac_dim)
    assert jnp.allclose(pred2, pred2_ref, atol=5e-3, rtol=5e-3), (
        float(jnp.max(jnp.abs(pred2 - pred2_ref))))
    assert jnp.allclose(G2, G2_ref, atol=5e-3, rtol=5e-3), (
        float(jnp.max(jnp.abs(G2 - G2_ref))))

    print("KERNEL_OK")
</pallas_src>

<mosaic_0001>
module attributes {stable_mosaic.version = 11 : i64} {
  func.func @gaussian_channel_kernel(%arg0: i32, %arg1: memref<8x8xf32, #tpu.memory_space<vmem>>, %arg2: memref<8x16xf32, #tpu.memory_space<vmem>>, %arg3: memref<16x128xf32, #tpu.memory_space<vmem>>, %arg4: memref<128x128xf32, #tpu.memory_space<vmem>>, %arg5: memref<8x512xbf16, #tpu.memory_space<vmem>>, %arg6: memref<1x512xf32, #tpu.memory_space<vmem>>, %arg7: memref<512x512xbf16, #tpu.memory_space<vmem>>, %arg8: memref<1x512xf32, #tpu.memory_space<vmem>>, %arg9: memref<512x512xbf16, #tpu.memory_space<vmem>>, %arg10: memref<1x512xf32, #tpu.memory_space<vmem>>, %arg11: memref<512x256xbf16, #tpu.memory_space<vmem>>, %arg12: memref<1x256xf32, #tpu.memory_space<vmem>>, %arg13: memref<8x128xf32, #tpu.memory_space<vmem>>, %arg14: memref<8x128xf32, #tpu.memory_space<vmem>>) attributes {dimension_semantics = [#tpu.dimension_semantics<parallel>], iteration_bounds = array<i64: 1>, scalar_prefetch = 0 : i64, scratch_operands = 0 : i64, tpu.core_type = #tpu.core_type<tc>, window_params = [{transform_indices = @transform_0, window_bounds = array<i64: 8, 8>}, {transform_indices = @transform_1, window_bounds = array<i64: 8, 16>}, {pipeline_mode = #tpu.pipeline_mode<synchronous>, transform_indices = @transform_2, window_bounds = array<i64: 16, 128>}, {pipeline_mode = #tpu.pipeline_mode<synchronous>, transform_indices = @transform_3, window_bounds = array<i64: 128, 128>}, {pipeline_mode = #tpu.pipeline_mode<synchronous>, transform_indices = @transform_4, window_bounds = array<i64: 8, 512>}, {pipeline_mode = #tpu.pipeline_mode<synchronous>, transform_indices = @transform_5, window_bounds = array<i64: 1, 512>}, {pipeline_mode = #tpu.pipeline_mode<synchronous>, transform_indices = @transform_6, window_bounds = array<i64: 512, 512>}, {pipeline_mode = #tpu.pipeline_mode<synchronous>, transform_indices = @transform_7, window_bounds = array<i64: 1, 512>}, {pipeline_mode = #tpu.pipeline_mode<synchronous>, transform_indices = @transform_8, window_bounds = array<i64: 512, 512>}, {pipeline_mode = #tpu.pipeline_mode<synchronous>, transform_indices = @transform_9, window_bounds = array<i64: 1, 512>}, {pipeline_mode = #tpu.pipeline_mode<synchronous>, transform_indices = @transform_10, window_bounds = array<i64: 512, 256>}, {pipeline_mode = #tpu.pipeline_mode<synchronous>, transform_indices = @transform_11, window_bounds = array<i64: 1, 256>}, {transform_indices = @transform_12, window_bounds = array<i64: 8, 128>}, {transform_indices = @transform_13, window_bounds = array<i64: 8, 128>}]} {
    %c0 = arith.constant 0 : index
    %c0_0 = arith.constant 0 : index
    %0 = vector.load %arg1[%c0, %c0_0] : memref<8x8xf32, #tpu.memory_space<vmem>>, vector<8x8xf32>
    %1 = arith.truncf %0 : vector<8x8xf32> to vector<8x8xbf16>
    %c0_1 = arith.constant 0 : index
    %c0_2 = arith.constant 0 : index
    %2 = vector.load %arg5[%c0_1, %c0_2] : memref<8x512xbf16, #tpu.memory_space<vmem>>, vector<8x512xbf16>
    %cst = arith.constant dense<0.000000e+00> : vector<8x512xf32>
    %3 = tpu.matmul %1, %2, %cst {dimension_numbers = #tpu.dot_dimension_numbers<[1], [0], [0], [1], [0, 0, 1, 1], [], []>} : vector<8x8xbf16>, vector<8x512xbf16>, vector<8x512xf32> -> vector<8x512xf32>
    %c0_3 = arith.constant 0 : index
    %c0_4 = arith.constant 0 : index
    %4 = vector.load %arg6[%c0_3, %c0_4] : memref<1x512xf32, #tpu.memory_space<vmem>>, vector<1x512xf32>
    %5 = vector.broadcast %4 : vector<1x512xf32> to vector<8x512xf32>
    %6 = arith.addf %3, %5 : vector<8x512xf32>
    %cst_5 = arith.constant 0.000000e+00 : f32
    %7 = vector.broadcast %cst_5 : f32 to vector<8x512xf32>
    %8 = arith.maximumf %6, %7 : vector<8x512xf32>
    %9 = arith.truncf %8 : vector<8x512xf32> to vector<8x512xbf16>
    %c0_6 = arith.constant 0 : index
    %c0_7 = arith.constant 0 : index
    %10 = vector.load %arg7[%c0_6, %c0_7] : memref<512x512xbf16, #tpu.memory_space<vmem>>, vector<512x512xbf16>
    %cst_8 = arith.constant dense<0.000000e+00> : vector<8x512xf32>
    %11 = tpu.matmul %9, %10, %cst_8 {dimension_numbers = #tpu.dot_dimension_numbers<[1], [0], [0], [1], [0, 0, 1, 1], [], []>} : vector<8x512xbf16>, vector<512x512xbf16>, vector<8x512xf32> -> vector<8x512xf32>
    %c0_9 = arith.constant 0 : index
    %c0_10 = arith.constant 0 : index
    %12 = vector.load %arg8[%c0_9, %c0_10] : memref<1x512xf32, #tpu.memory_space<vmem>>, vector<1x512xf32>
    %13 = vector.broadcast %12 : vector<1x512xf32> to vector<8x512xf32>
    %14 = arith.addf %11, %13 : vector<8x512xf32>
    %cst_11 = arith.constant 0.000000e+00 : f32
    %15 = vector.broadcast %cst_11 : f32 to vector<8x512xf32>
    %16 = arith.maximumf %14, %15 : vector<8x512xf32>
    %17 = arith.truncf %16 : vector<8x512xf32> to vector<8x512xbf16>
    %c0_12 = arith.constant 0 : index
    %c0_13 = arith.constant 0 : index
    %18 = vector.load %arg9[%c0_12, %c0_13] : memref<512x512xbf16, #tpu.memory_space<vmem>>, vector<512x512xbf16>
    %cst_14 = arith.constant dense<0.000000e+00> : vector<8x512xf32>
    %19 = tpu.matmul %17, %18, %cst_14 {dimension_numbers = #tpu.dot_dimension_numbers<[1], [0], [0], [1], [0, 0, 1, 1], [], []>} : vector<8x512xbf16>, vector<512x512xbf16>, vector<8x512xf32> -> vector<8x512xf32>
    %c0_15 = arith.constant 0 : index
    %c0_16 = arith.constant 0 : index
    %20 = vector.load %arg10[%c0_15, %c0_16] : memref<1x512xf32, #tpu.memory_space<vmem>>, vector<1x512xf32>
    %21 = vector.broadcast %20 : vector<1x512xf32> to vector<8x512xf32>
    %22 = arith.addf %19, %21 : vector<8x512xf32>
    %cst_17 = arith.constant 0.000000e+00 : f32
    %23 = vector.broadcast %cst_17 : f32 to vector<8x512xf32>
    %24 = arith.maximumf %22, %23 : vector<8x512xf32>
    %25 = arith.truncf %24 : vector<8x512xf32> to vector<8x512xbf16>
    %c0_18 = arith.constant 0 : index
    %c0_19 = arith.constant 0 : index
    %26 = vector.load %arg11[%c0_18, %c0_19] : memref<512x256xbf16, #tpu.memory_space<vmem>>, vector<512x256xbf16>
    %cst_20 = arith.constant dense<0.000000e+00> : vector<8x256xf32>
    %27 = tpu.matmul %25, %26, %cst_20 {dimension_numbers = #tpu.dot_dimension_numbers<[1], [0], [0], [1], [0, 0, 1, 1], [], []>} : vector<8x512xbf16>, vector<512x256xbf16>, vector<8x256xf32> -> vector<8x256xf32>
    %c0_21 = arith.constant 0 : index
    %c0_22 = arith.constant 0 : index
    %28 = vector.load %arg12[%c0_21, %c0_22] : memref<1x256xf32, #tpu.memory_space<vmem>>, vector<1x256xf32>
    %29 = vector.broadcast %28 : vector<1x256xf32> to vector<8x256xf32>
    %30 = arith.addf %27, %29 : vector<8x256xf32>
    %31 = vector.extract_strided_slice %30 {offsets = [0, 0], sizes = [8, 128], strides = [1, 1]} : vector<8x256xf32> to vector<8x128xf32>
    %32 = vector.extract_strided_slice %30 {offsets = [0, 128], sizes = [8, 128], strides = [1, 1]} : vector<8x256xf32> to vector<8x128xf32>
    %c0_23 = arith.constant 0 : index
    %c0_24 = arith.constant 0 : index
    %33 = vector.load %arg13[%c0_23, %c0_24] : memref<8x128xf32, #tpu.memory_space<vmem>>, vector<8x128xf32>
    tpu.vector_store %arg13[%c0_23, %c0_24], %31 {strides = array<i32>} : memref<8x128xf32, #tpu.memory_space<vmem>>, vector<8x128xf32>,
    %c0_25 = arith.constant 0 : index
    %c0_26 = arith.constant 0 : index
    %34 = vector.load %arg2[%c0_25, %c0_26] : memref<8x16xf32, #tpu.memory_space<vmem>>, vector<8x16xf32>
    %c0_27 = arith.constant 0 : index
    %c0_28 = arith.constant 0 : index
    %35 = vector.load %arg3[%c0_27, %c0_28] : memref<16x128xf32, #tpu.memory_space<vmem>>, vector<16x128xf32>
    %cst_29 = arith.constant dense<0.000000e+00> : vector<8x128xf32>
    %36 = tpu.matmul %34, %35, %cst_29 {dimension_numbers = #tpu.dot_dimension_numbers<[1], [0], [0], [1], [0, 0, 1, 1], [], []>} : vector<8x16xf32>, vector<16x128xf32>, vector<8x128xf32> -> vector<8x128xf32>
    %37 = arith.mulf %31, %36 : vector<8x128xf32>
    %c0_30 = arith.constant 0 : index
    %c0_31 = arith.constant 0 : index
    %38 = vector.load %arg4[%c0_30, %c0_31] : memref<128x128xf32, #tpu.memory_space<vmem>>, vector<128x128xf32>
    %cst_32 = arith.constant dense<0.000000e+00> : vector<8x128xf32>
    %39 = tpu.matmul %37, %38, %cst_32 {dimension_numbers = #tpu.dot_dimension_numbers<[1], [0], [0], [1], [0, 0, 1, 1], [], []>} : vector<8x128xf32>, vector<128x128xf32>, vector<8x128xf32> -> vector<8x128xf32>
    %40 = arith.addf %39, %32 : vector<8x128xf32>
    %c0_33 = arith.constant 0 : index
    %c0_34 = arith.constant 0 : index
    %41 = vector.load %arg14[%c0_33, %c0_34] : memref<8x128xf32, #tpu.memory_space<vmem>>, vector<8x128xf32>
    tpu.vector_store %arg14[%c0_33, %c0_34], %40 {strides = array<i32>} : memref<8x128xf32, #tpu.memory_space<vmem>>, vector<8x128xf32>,
    return
  }
  func.func @transform_0(%arg0: i32) -> (i32, i32) {
    %c0_i32 = arith.constant 0 : i32
    %c0_i32_0 = arith.constant 0 : i32
    return %arg0, %c0_i32 : i32, i32
  }
  func.func @transform_1(%arg0: i32) -> (i32, i32) {
    %c0_i32 = arith.constant 0 : i32
    %c0_i32_0 = arith.constant 0 : i32
    return %arg0, %c0_i32 : i32, i32
  }
  func.func @transform_2(%arg0: i32) -> (i32, i32) {
    %c0_i32 = arith.constant 0 : i32
    %c0_i32_0 = arith.constant 0 : i32
    %c0_i32_1 = arith.constant 0 : i32
    return %c0_i32, %c0_i32_0 : i32, i32
  }
  func.func @transform_3(%arg0: i32) -> (i32, i32) {
    %c0_i32 = arith.constant 0 : i32
    %c0_i32_0 = arith.constant 0 : i32
    %c0_i32_1 = arith.constant 0 : i32
    return %c0_i32, %c0_i32_0 : i32, i32
  }
  func.func @transform_4(%arg0: i32) -> (i32, i32) {
    %c0_i32 = arith.constant 0 : i32
    %c0_i32_0 = arith.constant 0 : i32
    %c0_i32_1 = arith.constant 0 : i32
    return %c0_i32, %c0_i32_0 : i32, i32
  }
  func.func @transform_5(%arg0: i32) -> (i32, i32) {
    %c0_i32 = arith.constant 0 : i32
    %c0_i32_0 = arith.constant 0 : i32
    %c0_i32_1 = arith.constant 0 : i32
    return %c0_i32, %c0_i32_0 : i32, i32
  }
  func.func @transform_6(%arg0: i32) -> (i32, i32) {
    %c0_i32 = arith.constant 0 : i32
    %c0_i32_0 = arith.constant 0 : i32
    %c0_i32_1 = arith.constant 0 : i32
    return %c0_i32, %c0_i32_0 : i32, i32
  }
  func.func @transform_7(%arg0: i32) -> (i32, i32) {
    %c0_i32 = arith.constant 0 : i32
    %c0_i32_0 = arith.constant 0 : i32
    %c0_i32_1 = arith.constant 0 : i32
    return %c0_i32, %c0_i32_0 : i32, i32
  }
  func.func @transform_8(%arg0: i32) -> (i32, i32) {
    %c0_i32 = arith.constant 0 : i32
    %c0_i32_0 = arith.constant 0 : i32
    %c0_i32_1 = arith.constant 0 : i32
    return %c0_i32, %c0_i32_0 : i32, i32
  }
  func.func @transform_9(%arg0: i32) -> (i32, i32) {
    %c0_i32 = arith.constant 0 : i32
    %c0_i32_0 = arith.constant 0 : i32
    %c0_i32_1 = arith.constant 0 : i32
    return %c0_i32, %c0_i32_0 : i32, i32
  }
  func.func @transform_10(%arg0: i32) -> (i32, i32) {
    %c0_i32 = arith.constant 0 : i32
    %c0_i32_0 = arith.constant 0 : i32
    %c0_i32_1 = arith.constant 0 : i32
    return %c0_i32, %c0_i32_0 : i32, i32
  }
  func.func @transform_11(%arg0: i32) -> (i32, i32) {
    %c0_i32 = arith.constant 0 : i32
    %c0_i32_0 = arith.constant 0 : i32
    %c0_i32_1 = arith.constant 0 : i32
    return %c0_i32, %c0_i32_0 : i32, i32
  }
  func.func @transform_12(%arg0: i32) -> (i32, i32) {
    %c0_i32 = arith.constant 0 : i32
    %c0_i32_0 = arith.constant 0 : i32
    return %arg0, %c0_i32 : i32, i32
  }
  func.func @transform_13(%arg0: i32) -> (i32, i32) {
    %c0_i32 = arith.constant 0 : i32
    %c0_i32_0 = arith.constant 0 : i32
    return %arg0, %c0_i32 : i32, i32
  }
}

</mosaic_0001>

<llo_original>
// kernel: tpu_custom_call.1
$region0: #{tpu_custom_call.1}
  #allocation0 [shape = 'u32[]', space=smem, size = 0x4, offset = 0x4, fixed_abs, tag = 'smem constant byte address 0x4 - core index']
  #allocation1 [shape = 'u32[72,128]{1,0:T(1,128)}', space=vmem, size = 0x9000, scoped, tag = 'internal scratch']
  %s0 = inlined_call_operand.hbm [shape: f32[8,8], index: 0, kind: input, shape index: {}]
  %s1 = inlined_call_operand.hbm [shape: f32[8,16], index: 1, kind: input, shape index: {}]
  %s2 = inlined_call_operand.hbm [shape: f32[16,128], index: 2, kind: input, shape index: {}]
  %s3 = inlined_call_operand.hbm [shape: f32[128,128], index: 3, kind: input, shape index: {}]
  %s4 = inlined_call_operand.hbm [shape: bf16[8,512], index: 4, kind: input, shape index: {}]
  %s5 = inlined_call_operand.vmem [shape: f32[1,512], index: 5, kind: input, shape index: {}]
  %s6 = inlined_call_operand.hbm [shape: bf16[512,512], index: 6, kind: input, shape index: {}]
  %s7 = inlined_call_operand.hbm [shape: f32[1,512], index: 7, kind: input, shape index: {}]
  %s8 = inlined_call_operand.hbm [shape: bf16[512,512], index: 8, kind: input, shape index: {}]
  %s9 = inlined_call_operand.vmem [shape: f32[1,512], index: 9, kind: input, shape index: {}]
  %s10 = inlined_call_operand.hbm [shape: bf16[512,256], index: 10, kind: input, shape index: {}]
  %s11 = inlined_call_operand.vmem [shape: f32[1,256], index: 11, kind: input, shape index: {}]
  %s12 = inlined_call_operand.hbm [shape: f32[8,128], index: 12, kind: output, shape index: {0}]
  %s13 = inlined_call_operand.hbm [shape: f32[8,128], index: 13, kind: output, shape index: {1}]
  %14 = xla_tuple %s12, %s13
  %s15 = sld [smem:[#allocation0]]
  $region102: #{tpu_custom_call.1} parent=0
    _
  %s17 = ssub.s32 1, %s15
  %s18 = scalar_select 0, %s17, %s15
  $region1: #{tpu_custom_call.1} parent=0
    #allocation2 [shape = 'u8[4096]{0}', space=vmem, size = 0x1000, scoped, tag = 'input window, operand 0, single buffered']
    #allocation3 [shape = 's32[1]{0}', space=sflag, size = 0x4, scoped, tag = 'scoped memory for tpu_custom_call.1']
    #allocation4 [shape = 's32[1]{0}', space=sflag, size = 0x4, scoped, tag = 'scoped memory for tpu_custom_call.1']
    #allocation5 [shape = 'u8[4096]{0}', space=vmem, size = 0x1000, scoped, tag = 'input window, operand 1, single buffered']
    #allocation6 [shape = 's32[1]{0}', space=sflag, size = 0x4, scoped, tag = 'scoped memory for tpu_custom_call.1']
    #allocation7 [shape = 'u8[8192]{0}', space=vmem, size = 0x2000, scoped, tag = 'input window, operand 2, single buffered']
    #allocation8 [shape = 'u8[65536]{0}', space=vmem, size = 0x10000, scoped, tag = 'input window, operand 3, single buffered']
    #allocation9 [shape = 's32[1]{0}', space=sflag, size = 0x4, scoped, tag = 'scoped memory for tpu_custom_call.1']
    #allocation10 [shape = 'u8[8192]{0}', space=vmem, size = 0x2000, scoped, tag = 'input window, operand 4, single buffered']
    #allocation11 [shape = 'u8[524288]{0}', space=vmem, size = 0x80000, scoped, tag = 'input window, operand 6, single buffered']
    #allocation12 [shape = 's32[1]{0}', space=sflag, size = 0x4, scoped, tag = 'scoped memory for tpu_custom_call.1']
    #allocation13 [shape = 'u8[2048]{0}', space=vmem, size = 0x800, scoped, tag = 'input window, operand 7, single buffered']
    #allocation14 [shape = 'u8[524288]{0}', space=vmem, size = 0x80000, scoped, tag = 'input window, operand 8, single buffered']
    #allocation15 [shape = 's32[1]{0}', space=sflag, size = 0x4, scoped, tag = 'scoped memory for tpu_custom_call.1']
    #allocation16 [shape = 'u8[262144]{0}', space=vmem, size = 0x40000, scoped, tag = 'input window, operand 10, single buffered']
    #allocation17 [shape = 'u8[4096]{0}', space=vmem, size = 0x1000, scoped, tag = 'output window, operand 0, single buffered']
    #allocation18 [shape = 'u8[4096]{0}', space=vmem, size = 0x1000, scoped, tag = 'output window, operand 1, single buffered']
    #allocation19 [shape = 's32[1]{0}', space=sflag, size = 0x4, scoped, tag = 'scoped memory for tpu_custom_call.1']
    %19 = vsyncpa [#allocation3], 0
    %20 = vsyncpa [#allocation6], 0
    %21 = vsyncpa [#allocation9], 0
    %22 = vsyncpa [#allocation12], 0
    %23 = vsyncpa [#allocation15], 0
    %24 = vsyncpa [#allocation4], 0
    %25 = vsyncpa [#allocation19], 0
    // Predicated region
    $region2: #{tpu_custom_call.1} parent=1 // pred_check
      _
    $region3: #{tpu_custom_call.1} parent=1 // pred_check_branch
      %27 = sbr.rel (0) target = $region5
    $region4: #{tpu_custom_call.1} parent=1 // pred_region
      %29 = vsyncadd [#allocation3], 0
      %s31 = sshll.u32 %s0, 4
      %s32 = int_to_ptr.hbm [resolvable:$true] %s31
      %s33 = sshll.u32 [#allocation2], 4
      %s34 = int_to_ptr.vmem [resolvable:$true] %s33
      %36 = dma.hbm_to_vmem [thread:$0]  %s32, 128, %s34, [#allocation3]
    $region5: #{tpu_custom_call.1} parent=1 // pred_fallthru
      _
    // Predicated region
    $region6: #{tpu_custom_call.1} parent=1 // pred_check
      _
    $region7: #{tpu_custom_call.1} parent=1 // pred_check_branch
      %38 = sbr.rel (0) target = $region9
    $region8: #{tpu_custom_call.1} parent=1 // pred_region
      %40 = vsyncadd [#allocation6], 0
      %s42 = sshll.u32 %s1, 4
      %s43 = int_to_ptr.hbm [resolvable:$true] %s42
      %s44 = sshll.u32 [#allocation5], 4
      %s45 = int_to_ptr.vmem [resolvable:$true] %s44
      %47 = dma.hbm_to_vmem [thread:$0]  %s43, 128, %s45, [#allocation6]
    $region9: #{tpu_custom_call.1} parent=1 // pred_fallthru
      _
    // Predicated region
    $region10: #{tpu_custom_call.1} parent=1 // pred_check
      _
    $region11: #{tpu_custom_call.1} parent=1 // pred_check_branch
      %49 = sbr.rel (0) target = $region13
    $region12: #{tpu_custom_call.1} parent=1 // pred_region
      %51 = vsyncadd [#allocation6], 0
      %s52 = sshll.u32 %s2, 4
      %s53 = int_to_ptr.hbm [resolvable:$true] %s52
      %s54 = sshll.u32 [#allocation7], 4
      %s55 = int_to_ptr.vmem [resolvable:$true] %s54
      %60 = dma.hbm_to_vmem [thread:$0]  %s53, 256, %s55, [#allocation6], 128, 128, 8
    $region13: #{tpu_custom_call.1} parent=1 // pred_fallthru
      _
    // Predicated region
    $region14: #{tpu_custom_call.1} parent=1 // pred_check
      _
    $region15: #{tpu_custom_call.1} parent=1 // pred_check_branch
      %62 = sbr.rel (0) target = $region17
    $region16: #{tpu_custom_call.1} parent=1 // pred_region
      %64 = vsyncadd [#allocation9], 0
      %s65 = sshll.u32 %s3, 4
      %s66 = int_to_ptr.hbm [resolvable:$true] %s65
      %s67 = sshll.u32 [#allocation8], 4
      %s68 = int_to_ptr.vmem [resolvable:$true] %s67
      %73 = dma.hbm_to_vmem [thread:$0]  %s66, 2048, %s68, [#allocation9], 128, 128, 8
    $region17: #{tpu_custom_call.1} parent=1 // pred_fallthru
      _
    // Predicated region
    $region18: #{tpu_custom_call.1} parent=1 // pred_check
      _
    $region19: #{tpu_custom_call.1} parent=1 // pred_check_branch
      %75 = sbr.rel (0) target = $region21
    $region20: #{tpu_custom_call.1} parent=1 // pred_region
      %77 = vsyncadd [#allocation9], 0
      %s79 = sshll.u32 %s4, 4
      %s80 = int_to_ptr.hbm [resolvable:$true] %s79
      %s81 = sshll.u32 [#allocation10], 4
      %s82 = int_to_ptr.vmem [resolvable:$true] %s81
      %84 = dma.hbm_to_vmem [thread:$0]  %s80, 256, %s82, [#allocation9]
    $region21: #{tpu_custom_call.1} parent=1 // pred_fallthru
      _
    // Predicated region
    $region22: #{tpu_custom_call.1} parent=1 // pred_check
      _
    $region23: #{tpu_custom_call.1} parent=1 // pred_check_branch
      %86 = sbr.rel (0) target = $region25
    $region24: #{tpu_custom_call.1} parent=1 // pred_region
      _
    $region25: #{tpu_custom_call.1} parent=1 // pred_fallthru
      _
    // Predicated region
    $region26: #{tpu_custom_call.1} parent=1 // pred_check
      _
    $region27: #{tpu_custom_call.1} parent=1 // pred_check_branch
      %88 = sbr.rel (0) target = $region29
    $region28: #{tpu_custom_call.1} parent=1 // pred_region
      %90 = vsyncadd [#allocation12], 0
      %s91 = sshll.u32 %s6, 4
      %s92 = int_to_ptr.hbm [resolvable:$true] %s91
      %s93 = sshll.u32 [#allocation11], 4
      %s94 = int_to_ptr.vmem [resolvable:$true] %s93
      %99 = dma.hbm_to_vmem [thread:$0]  %s92, 16384, %s94, [#allocation12], 256, 256, 16
    $region29: #{tpu_custom_call.1} parent=1 // pred_fallthru
      _
    // Predicated region
    $region30: #{tpu_custom_call.1} parent=1 // pred_check
      _
    $region31: #{tpu_custom_call.1} parent=1 // pred_check_branch
      %101 = sbr.rel (0) target = $region33
    $region32: #{tpu_custom_call.1} parent=1 // pred_region
      %103 = vsyncadd [#allocation12], 0
      %s105 = sshll.u32 %s7, 4
      %s106 = int_to_ptr.hbm [resolvable:$true] %s105
      %s107 = sshll.u32 [#allocation13], 4
      %s108 = int_to_ptr.vmem [resolvable:$true] %s107
      %110 = dma.hbm_to_vmem [thread:$0]  %s106, 64, %s108, [#allocation12]
    $region33: #{tpu_custom_call.1} parent=1 // pred_fallthru
      _
    // Predicated region
    $region34: #{tpu_custom_call.1} parent=1 // pred_check
      _
    $region35: #{tpu_custom_call.1} parent=1 // pred_check_branch
      %112 = sbr.rel (0) target = $region37
    $region36: #{tpu_custom_call.1} parent=1 // pred_region
      %114 = vsyncadd [#allocation15], 0
      %s115 = sshll.u32 %s8, 4
      %s116 = int_to_ptr.hbm [resolvable:$true] %s115
      %s117 = sshll.u32 [#allocation14], 4
      %s118 = int_to_ptr.vmem [resolvable:$true] %s117
      %123 = dma.hbm_to_vmem [thread:$0]  %s116, 16384, %s118, [#allocation15], 256, 256, 16
    $region37: #{tpu_custom_call.1} parent=1 // pred_fallthru
      _
    // Predicated region
    $region38: #{tpu_custom_call.1} parent=1 // pred_check
      _
    $region39: #{tpu_custom_call.1} parent=1 // pred_check_branch
      %125 = sbr.rel (0) target = $region41
    $region40: #{tpu_custom_call.1} parent=1 // pred_region
      _
    $region41: #{tpu_custom_call.1} parent=1 // pred_fallthru
      _
    // Predicated region
    $region42: #{tpu_custom_call.1} parent=1 // pred_check
      _
    $region43: #{tpu_custom_call.1} parent=1 // pred_check_branch
      %127 = sbr.rel (0) target = $region45
    $region44: #{tpu_custom_call.1} parent=1 // pred_region
      %129 = vsyncadd [#allocation15], 0
      %s130 = sshll.u32 %s10, 4
      %s131 = int_to_ptr.hbm [resolvable:$true] %s130
      %s132 = sshll.u32 [#allocation16], 4
      %s133 = int_to_ptr.vmem [resolvable:$true] %s132
      %138 = dma.hbm_to_vmem [thread:$0]  %s131, 8192, %s133, [#allocation15], 128, 128, 8
    $region45: #{tpu_custom_call.1} parent=1 // pred_fallthru
      _
    // Predicated region
    $region46: #{tpu_custom_call.1} parent=1 // pred_check
      _
    $region47: #{tpu_custom_call.1} parent=1 // pred_check_branch
      %140 = sbr.rel (0) target = $region49
    $region48: #{tpu_custom_call.1} parent=1 // pred_region
      _
    $region49: #{tpu_custom_call.1} parent=1 // pred_fallthru
      _
    // Predicated region
    $region50: #{tpu_custom_call.1} parent=1 // pred_check
      _
    $region51: #{tpu_custom_call.1} parent=1 // pred_check_branch
      %142 = sbr.rel (0) target = $region53
    $region52: #{tpu_custom_call.1} parent=1 // pred_region
      %144 = dma.done [#allocation3], 128
    $region53: #{tpu_custom_call.1} parent=1 // pred_fallthru
      _
    // Predicated region
    $region54: #{tpu_custom_call.1} parent=1 // pred_check
      _
    $region55: #{tpu_custom_call.1} parent=1 // pred_check_branch
      %146 = sbr.rel (0) target = $region57
    $region56: #{tpu_custom_call.1} parent=1 // pred_region
      %148 = dma.done [#allocation6], 128
    $region57: #{tpu_custom_call.1} parent=1 // pred_fallthru
      _
    // Predicated region
    $region58: #{tpu_custom_call.1} parent=1 // pred_check
      _
    $region59: #{tpu_custom_call.1} parent=1 // pred_check_branch
      %150 = sbr.rel (0) target = $region61
    $region60: #{tpu_custom_call.1} parent=1 // pred_region
      %152 = dma.done [#allocation6], 256
    $region61: #{tpu_custom_call.1} parent=1 // pred_fallthru
      _
    // Predicated region
    $region62: #{tpu_custom_call.1} parent=1 // pred_check
      _
    $region63: #{tpu_custom_call.1} parent=1 // pred_check_branch
      %154 = sbr.rel (0) target = $region65
    $region64: #{tpu_custom_call.1} parent=1 // pred_region
      %156 = dma.done [#allocation9], 2048
    $region65: #{tpu_custom_call.1} parent=1 // pred_fallthru
      _
    // Predicated region
    $region66: #{tpu_custom_call.1} parent=1 // pred_check
      _
    $region67: #{tpu_custom_call.1} parent=1 // pred_check_branch
      %158 = sbr.rel (0) target = $region69
    $region68: #{tpu_custom_call.1} parent=1 // pred_region
      %160 = dma.done [#allocation9], 256
    $region69: #{tpu_custom_call.1} parent=1 // pred_fallthru
      _
    // Predicated region
    $region70: #{tpu_custom_call.1} parent=1 // pred_check
      _
    $region71: #{tpu_custom_call.1} parent=1 // pred_check_branch
      %162 = sbr.rel (0) target = $region73
    $region72: #{tpu_custom_call.1} parent=1 // pred_region
      %164 = dma.done [#allocation12], 16384
    $region73: #{tpu_custom_call.1} parent=1 // pred_fallthru
      _
    // Predicated region
    $region74: #{tpu_custom_call.1} parent=1 // pred_check
      _
    $region75: #{tpu_custom_call.1} parent=1 // pred_check_branch
      %166 = sbr.rel (0) target = $region77
    $region76: #{tpu_custom_call.1} parent=1 // pred_region
      %168 = dma.done [#allocation12], 64
    $region77: #{tpu_custom_call.1} parent=1 // pred_fallthru
      _
    // Predicated region
    $region78: #{tpu_custom_call.1} parent=1 // pred_check
      _
    $region79: #{tpu_custom_call.1} parent=1 // pred_check_branch
      %170 = sbr.rel (0) target = $region81
    $region80: #{tpu_custom_call.1} parent=1 // pred_region
      %172 = dma.done [#allocation15], 16384
    $region81: #{tpu_custom_call.1} parent=1 // pred_fallthru
      _
    // Predicated region
    $region82: #{tpu_custom_call.1} parent=1 // pred_check
      _
    $region83: #{tpu_custom_call.1} parent=1 // pred_check_branch
      %174 = sbr.rel (0) target = $region85
    $region84: #{tpu_custom_call.1} parent=1 // pred_region
      %176 = dma.done [#allocation15], 8192
    $region85: #{tpu_custom_call.1} parent=1 // pred_fallthru
      _
    %v178 = vld [vmem:[#allocation2] sm:$0xff]
    %v179 = vpack.c.bf16 %v178, %v178
    %v180 = vld [vmem:[#allocation10] sm:$0xff]
    %v181 = vld [vmem:[#allocation10 + $0x8] sm:$0xff]
    %v182 = vld [vmem:[%s5] sm:$0xf]
    %v184 = vperm.slane %v182, 0
    %v185 = vperm.slane %v182, 1
    %v186 = vperm.slane %v182, 2
    %v187 = vperm.slane %v182, 3
    %v194 = vunpack.c.l.b16 %v180
    %v195 = vunpack.c.h.b16 %v180
    %v196 = vunpack.c.l.b16 %v181
    %v197 = vunpack.c.h.b16 %v181
    %v198 = vpack.c.b16 %v194, %v194
    %v199 = vpack.c.b16 %v195, %v195
    %v200 = vpack.c.b16 %v196, %v196
    %v201 = vpack.c.b16 %v197, %v197
    %vm202 = vcmask 64512
    %v204 = vsel %vm202, %v179, 0
    %vm206 = vcmask 1043456
    %v208 = vsel %vm206, %v198, 0
    %v211 = vsel %vm206, %v199, 0
    %v214 = vsel %vm206, %v200, 0
    %v217 = vsel %vm206, %v201, 0
    %219 = vmatpush.bf16.msra.mxu0 0
    %220 = vmatpush.bf16.msra.mxu0 0
    %221 = vmatpush.bf16.msra.mxu0 0
    %222 = vmatpush.bf16.msra.mxu0 0
    %223 = vmatpush.bf16.msra.mxu0 0
    %224 = vmatpush.bf16.msra.mxu0 0
    %225 = vmatpush.bf16.msra.mxu0 0
    %226 = vmatpush.bf16.msra.mxu0 %v208
    %227 = vmatmul.bf16.gmra.mxu0 %v204
    %v228 = vpop.f32.mrf.mxu0
    %v229 = vadd.f32 %v184, %v228
    %v230 = vpop.f32.mrf.mxu0
    %231 = vdwg.mxu0
    %232 = vmatpush.bf16.msra.mxu0 0
    %233 = vmatpush.bf16.msra.mxu0 0
    %234 = vmatpush.bf16.msra.mxu0 0
    %235 = vmatpush.bf16.msra.mxu0 0
    %236 = vmatpush.bf16.msra.mxu0 0
    %237 = vmatpush.bf16.msra.mxu0 0
    %238 = vmatpush.bf16.msra.mxu0 0
    %239 = vmatpush.bf16.msra.mxu0 %v211
    %240 = vmatmul.bf16.gmra.mxu0 %v204
    %v241 = vpop.f32.mrf.mxu0
    %v242 = vadd.f32 %v185, %v241
    %v243 = vpop.f32.mrf.mxu0
    %244 = vdwg.mxu0
    %245 = vmatpush.bf16.msra.mxu0 0
    %246 = vmatpush.bf16.msra.mxu0 0
    %247 = vmatpush.bf16.msra.mxu0 0
    %248 = vmatpush.bf16.msra.mxu0 0
    %249 = vmatpush.bf16.msra.mxu0 0
    %250 = vmatpush.bf16.msra.mxu0 0
    %251 = vmatpush.bf16.msra.mxu0 0
    %252 = vmatpush.bf16.msra.mxu0 %v214
    %253 = vmatmul.bf16.gmra.mxu0 %v204
    %v254 = vpop.f32.mrf.mxu0
    %v255 = vadd.f32 %v186, %v254
    %v256 = vpop.f32.mrf.mxu0
    %257 = vdwg.mxu0
    %258 = vmatpush.bf16.msra.mxu0 0
    %259 = vmatpush.bf16.msra.mxu0 0
    %260 = vmatpush.bf16.msra.mxu0 0
    %261 = vmatpush.bf16.msra.mxu0 0
    %262 = vmatpush.bf16.msra.mxu0 0
    %263 = vmatpush.bf16.msra.mxu0 0
    %264 = vmatpush.bf16.msra.mxu0 0
    %265 = vmatpush.bf16.msra.mxu0 %v217
    %266 = vmatmul.bf16.gmra.mxu0 %v204
    %v267 = vpop.f32.mrf.mxu0
    %v268 = vadd.f32 %v187, %v267
    %v269 = vpop.f32.mrf.mxu0
    %270 = vdwg.mxu0
    %v271 = vmax.f32 %v229, 0.0
    %v272 = vmax.f32 %v242, 0.0
    %v273 = vmax.f32 %v255, 0.0
    %v274 = vmax.f32 %v268, 0.0
    %v275 = vpack.c.bf16 %v271, %v271
    %v276 = vpack.c.bf16 %v272, %v272
    %v277 = vpack.c.bf16 %v273, %v273
    %v278 = vpack.c.bf16 %v274, %v274
    %v279 = vld [vmem:[#allocation11] sm:$0xff]
    %v280 = vld [vmem:[#allocation11 + $0x8] sm:$0xff]
    %v281 = vld [vmem:[#allocation11 + $0x10] sm:$0xff]
    %v282 = vld [vmem:[#allocation11 + $0x18] sm:$0xff]
    %v283 = vld [vmem:[#allocation11 + $0x20] sm:$0xff]
    %v284 = vld [vmem:[#allocation11 + $0x28] sm:$0xff]
    %v285 = vld [vmem:[#allocation11 + $0x30] sm:$0xff]
    %v286 = vld [vmem:[#allocation11 + $0x38] sm:$0xff]
    %v287 = vld [vmem:[#allocation11 + $0x40] sm:$0xff]
    %v288 = vld [vmem:[#allocation11 + $0x48] sm:$0xff]
    %v289 = vld [vmem:[#allocation11 + $0x50] sm:$0xff]
    %v290 = vld [vmem:[#allocation11 + $0x58] sm:$0xff]
    %v291 = vld [vmem:[#allocation11 + $0x60] sm:$0xff]
    %v292 = vld [vmem:[#allocation11 + $0x68] sm:$0xff]
    %v293 = vld [vmem:[#allocation11 + $0x70] sm:$0xff]
    %v294 = vld [vmem:[#allocation11 + $0x78] sm:$0xff]
    %v295 = vld [vmem:[#allocation11 + $0x80] sm:$0xff]
    %v296 = vld [vmem:[#allocation11 + $0x88] sm:$0xff]
    %v297 = vld [vmem:[#allocation11 + $0x90] sm:$0xff]
    %v298 = vld [vmem:[#allocation11 + $0x98] sm:$0xff]
    %v299 = vld [vmem:[#allocation11 + $0xa0] sm:$0xff]
    %v300 = vld [vmem:[#allocation11 + $0xa8] sm:$0xff]
    %v301 = vld [vmem:[#allocation11 + $0xb0] sm:$0xff]
    %v302 = vld [vmem:[#allocation11 + $0xb8] sm:$0xff]
    %v303 = vld [vmem:[#allocation11 + $0xc0] sm:$0xff]
    %v304 = vld [vmem:[#allocation11 + $0xc8] sm:$0xff]
    %v305 = vld [vmem:[#allocation11 + $0xd0] sm:$0xff]
    %v306 = vld [vmem:[#allocation11 + $0xd8] sm:$0xff]
    %v307 = vld [vmem:[#allocation11 + $0xe0] sm:$0xff]
    %v308 = vld [vmem:[#allocation11 + $0xe8] sm:$0xff]
    %v309 = vld [vmem:[#allocation11 + $0xf0] sm:$0xff]
    %v310 = vld [vmem:[#allocation11 + $0xf8] sm:$0xff]
    %v311 = vld [vmem:[#allocation11 + $0x100] sm:$0xff]
    %v312 = vld [vmem:[#allocation11 + $0x108] sm:$0xff]
    %v313 = vld [vmem:[#allocation11 + $0x110] sm:$0xff]
    %v314 = vld [vmem:[#allocation11 + $0x118] sm:$0xff]
    %v315 = vld [vmem:[#allocation11 + $0x120] sm:$0xff]
    %v316 = vld [vmem:[#allocation11 + $0x128] sm:$0xff]
    %v317 = vld [vmem:[#allocation11 + $0x130] sm:$0xff]
    %v318 = vld [vmem:[#allocation11 + $0x138] sm:$0xff]
    %v319 = vld [vmem:[#allocation11 + $0x140] sm:$0xff]
    %v320 = vld [vmem:[#allocation11 + $0x148] sm:$0xff]
    %v321 = vld [vmem:[#allocation11 + $0x150] sm:$0xff]
    %v322 = vld [vmem:[#allocation11 + $0x158] sm:$0xff]
    %v323 = vld [vmem:[#allocation11 + $0x160] sm:$0xff]
    %v324 = vld [vmem:[#allocation11 + $0x168] sm:$0xff]
    %v325 = vld [vmem:[#allocation11 + $0x170] sm:$0xff]
    %v326 = vld [vmem:[#allocation11 + $0x178] sm:$0xff]
    %v327 = vld [vmem:[#allocation11 + $0x180] sm:$0xff]
    %v328 = vld [vmem:[#allocation11 + $0x188] sm:$0xff]
    %v329 = vld [vmem:[#allocation11 + $0x190] sm:$0xff]
    %v330 = vld [vmem:[#allocation11 + $0x198] sm:$0xff]
    %v331 = vld [vmem:[#allocation11 + $0x1a0] sm:$0xff]
    %v332 = vld [vmem:[#allocation11 + $0x1a8] sm:$0xff]
    %v333 = vld [vmem:[#allocation11 + $0x1b0] sm:$0xff]
    %v334 = vld [vmem:[#allocation11 + $0x1b8] sm:$0xff]
    %v335 = vld [vmem:[#allocation11 + $0x1c0] sm:$0xff]
    %v336 = vld [vmem:[#allocation11 + $0x1c8] sm:$0xff]
    %v337 = vld [vmem:[#allocation11 + $0x1d0] sm:$0xff]
    %v338 = vld [vmem:[#allocation11 + $0x1d8] sm:$0xff]
    %v339 = vld [vmem:[#allocation11 + $0x1e0] sm:$0xff]
    %v340 = vld [vmem:[#allocation11 + $0x1e8] sm:$0xff]
    %v341 = vld [vmem:[#allocation11 + $0x1f0] sm:$0xff]
    %v342 = vld [vmem:[#allocation11 + $0x1f8] sm:$0xff]
    %v343 = vld [vmem:[#allocation11 + $0x200] sm:$0xff]
    %v344 = vld [vmem:[#allocation11 + $0x208] sm:$0xff]
    %v345 = vld [vmem:[#allocation11 + $0x210] sm:$0xff]
    %v346 = vld [vmem:[#allocation11 + $0x218] sm:$0xff]
    %v347 = vld [vmem:[#allocation11 + $0x220] sm:$0xff]
    %v348 = vld [vmem:[#allocation11 + $0x228] sm:$0xff]
    %v349 = vld [vmem:[#allocation11 + $0x230] sm:$0xff]
    %v350 = vld [vmem:[#allocation11 + $0x238] sm:$0xff]
    %v351 = vld [vmem:[#allocation11 + $0x240] sm:$0xff]
    %v352 = vld [vmem:[#allocation11 + $0x248] sm:$0xff]
    %v353 = vld [vmem:[#allocation11 + $0x250] sm:$0xff]
    %v354 = vld [vmem:[#allocation11 + $0x258] sm:$0xff]
    %v355 = vld [vmem:[#allocation11 + $0x260] sm:$0xff]
    %v356 = vld [vmem:[#allocation11 + $0x268] sm:$0xff]
    %v357 = vld [vmem:[#allocation11 + $0x270] sm:$0xff]
    %v358 = vld [vmem:[#allocation11 + $0x278] sm:$0xff]
    %v359 = vld [vmem:[#allocation11 + $0x280] sm:$0xff]
    %v360 = vld [vmem:[#allocation11 + $0x288] sm:$0xff]
    %v361 = vld [vmem:[#allocation11 + $0x290] sm:$0xff]
    %v362 = vld [vmem:[#allocation11 + $0x298] sm:$0xff]
    %v363 = vld [vmem:[#allocation11 + $0x2a0] sm:$0xff]
    %v364 = vld [vmem:[#allocation11 + $0x2a8] sm:$0xff]
    %v365 = vld [vmem:[#allocation11 + $0x2b0] sm:$0xff]
    %v366 = vld [vmem:[#allocation11 + $0x2b8] sm:$0xff]
    %v367 = vld [vmem:[#allocation11 + $0x2c0] sm:$0xff]
    %v368 = vld [vmem:[#allocation11 + $0x2c8] sm:$0xff]
    %v369 = vld [vmem:[#allocation11 + $0x2d0] sm:$0xff]
    %v370 = vld [vmem:[#allocation11 + $0x2d8] sm:$0xff]
    %v371 = vld [vmem:[#allocation11 + $0x2e0] sm:$0xff]
    %v372 = vld [vmem:[#allocation11 + $0x2e8] sm:$0xff]
    %v373 = vld [vmem:[#allocation11 + $0x2f0] sm:$0xff]
    %v374 = vld [vmem:[#allocation11 + $0x2f8] sm:$0xff]
    %v375 = vld [vmem:[#allocation11 + $0x300] sm:$0xff]
    %v376 = vld [vmem:[#allocation11 + $0x308] sm:$0xff]
    %v377 = vld [vmem:[#allocation11 + $0x310] sm:$0xff]
    %v378 = vld [vmem:[#allocation11 + $0x318] sm:$0xff]
    %v379 = vld [vmem:[#allocation11 + $0x320] sm:$0xff]
    %v380 = vld [vmem:[#allocation11 + $0x328] sm:$0xff]
    %v381 = vld [vmem:[#allocation11 + $0x330] sm:$0xff]
    %v382 = vld [vmem:[#allocation11 + $0x338] sm:$0xff]
    %v383 = vld [vmem:[#allocation11 + $0x340] sm:$0xff]
    %v384 = vld [vmem:[#allocation11 + $0x348] sm:$0xff]
    %v385 = vld [vmem:[#allocation11 + $0x350] sm:$0xff]
    %v386 = vld [vmem:[#allocation11 + $0x358] sm:$0xff]
    %v387 = vld [vmem:[#allocation11 + $0x360] sm:$0xff]
    %v388 = vld [vmem:[#allocation11 + $0x368] sm:$0xff]
    %v389 = vld [vmem:[#allocation11 + $0x370] sm:$0xff]
    %v390 = vld [vmem:[#allocation11 + $0x378] sm:$0xff]
    %v391 = vld [vmem:[#allocation11 + $0x380] sm:$0xff]
    %v392 = vld [vmem:[#allocation11 + $0x388] sm:$0xff]
    %v393 = vld [vmem:[#allocation11 + $0x390] sm:$0xff]
    %v394 = vld [vmem:[#allocation11 + $0x398] sm:$0xff]
    %v395 = vld [vmem:[#allocation11 + $0x3a0] sm:$0xff]
    %v396 = vld [vmem:[#allocation11 + $0x3a8] sm:$0xff]
    %v397 = vld [vmem:[#allocation11 + $0x3b0] sm:$0xff]
    %v398 = vld [vmem:[#allocation11 + $0x3b8] sm:$0xff]
    %v399 = vld [vmem:[#allocation11 + $0x3c0] sm:$0xff]
    %v400 = vld [vmem:[#allocation11 + $0x3c8] sm:$0xff]
    %v401 = vld [vmem:[#allocation11 + $0x3d0] sm:$0xff]
    %v402 = vld [vmem:[#allocation11 + $0x3d8] sm:$0xff]
    %v403 = vld [vmem:[#allocation11 + $0x3e0] sm:$0xff]
    %v404 = vld [vmem:[#allocation11 + $0x3e8] sm:$0xff]
    %v405 = vld [vmem:[#allocation11 + $0x3f0] sm:$0xff]
    %v406 = vld [vmem:[#allocation11 + $0x3f8] sm:$0xff]
    %v407 = vld [vmem:[#allocation13] sm:$0xf]
    %v409 = vperm.slane %v407, 0
    %v410 = vperm.slane %v407, 1
    %v411 = vperm.slane %v407, 2
    %v412 = vperm.slane %v407, 3
    %v545 = vunpack.c.l.b16 %v279
    %v546 = vunpack.c.h.b16 %v279
    %v547 = vunpack.c.l.b16 %v280
    %v548 = vunpack.c.h.b16 %v280
    %v549 = vunpack.c.l.b16 %v281
    %v550 = vunpack.c.h.b16 %v281
    %v551 = vunpack.c.l.b16 %v282
    %v552 = vunpack.c.h.b16 %v282
    %v553 = vunpack.c.l.b16 %v283
    %v554 = vunpack.c.h.b16 %v283
    %v555 = vunpack.c.l.b16 %v284
    %v556 = vunpack.c.h.b16 %v284
    %v557 = vunpack.c.l.b16 %v285
    %v558 = vunpack.c.h.b16 %v285
    %v559 = vunpack.c.l.b16 %v286
    %v560 = vunpack.c.h.b16 %v286
    %v561 = vunpack.c.l.b16 %v287
    %v562 = vunpack.c.h.b16 %v287
    %v563 = vunpack.c.l.b16 %v288
    %v564 = vunpack.c.h.b16 %v288
    %v565 = vunpack.c.l.b16 %v289
    %v566 = vunpack.c.h.b16 %v289
    %v567 = vunpack.c.l.b16 %v290
    %v568 = vunpack.c.h.b16 %v290
    %v569 = vunpack.c.l.b16 %v291
    %v570 = vunpack.c.h.b16 %v291
    %v571 = vunpack.c.l.b16 %v292
    %v572 = vunpack.c.h.b16 %v292
    %v573 = vunpack.c.l.b16 %v293
    %v574 = vunpack.c.h.b16 %v293
    %v575 = vunpack.c.l.b16 %v294
    %v576 = vunpack.c.h.b16 %v294
    %v577 = vunpack.c.l.b16 %v295
    %v578 = vunpack.c.h.b16 %v295
    %v579 = vunpack.c.l.b16 %v296
    %v580 = vunpack.c.h.b16 %v296
    %v581 = vunpack.c.l.b16 %v297
    %v582 = vunpack.c.h.b16 %v297
    %v583 = vunpack.c.l.b16 %v298
    %v584 = vunpack.c.h.b16 %v298
    %v585 = vunpack.c.l.b16 %v299
    %v586 = vunpack.c.h.b16 %v299
    %v587 = vunpack.c.l.b16 %v300
    %v588 = vunpack.c.h.b16 %v300
    %v589 = vunpack.c.l.b16 %v301
    %v590 = vunpack.c.h.b16 %v301
    %v591 = vunpack.c.l.b16 %v302
    %v592 = vunpack.c.h.b16 %v302
    %v593 = vunpack.c.l.b16 %v303
    %v594 = vunpack.c.h.b16 %v303
    %v595 = vunpack.c.l.b16 %v304
    %v596 = vunpack.c.h.b16 %v304
    %v597 = vunpack.c.l.b16 %v305
    %v598 = vunpack.c.h.b16 %v305
    %v599 = vunpack.c.l.b16 %v306
    %v600 = vunpack.c.h.b16 %v306
    %v601 = vunpack.c.l.b16 %v307
    %v602 = vunpack.c.h.b16 %v307
    %v603 = vunpack.c.l.b16 %v308
    %v604 = vunpack.c.h.b16 %v308
    %v605 = vunpack.c.l.b16 %v309
    %v606 = vunpack.c.h.b16 %v309
    %v607 = vunpack.c.l.b16 %v310
    %v608 = vunpack.c.h.b16 %v310
    %v609 = vunpack.c.l.b16 %v311
    %v610 = vunpack.c.h.b16 %v311
    %v611 = vunpack.c.l.b16 %v312
    %v612 = vunpack.c.h.b16 %v312
    %v613 = vunpack.c.l.b16 %v313
    %v614 = vunpack.c.h.b16 %v313
    %v615 = vunpack.c.l.b16 %v314
    %v616 = vunpack.c.h.b16 %v314
    %v617 = vunpack.c.l.b16 %v315
    %v618 = vunpack.c.h.b16 %v315
    %v619 = vunpack.c.l.b16 %v316
    %v620 = vunpack.c.h.b16 %v316
    %v621 = vunpack.c.l.b16 %v317
    %v622 = vunpack.c.h.b16 %v317
    %v623 = vunpack.c.l.b16 %v318
    %v624 = vunpack.c.h.b16 %v318
    %v625 = vunpack.c.l.b16 %v319
    %v626 = vunpack.c.h.b16 %v319
    %v627 = vunpack.c.l.b16 %v320
    %v628 = vunpack.c.h.b16 %v320
    %v629 = vunpack.c.l.b16 %v321
    %v630 = vunpack.c.h.b16 %v321
    %v631 = vunpack.c.l.b16 %v322
    %v632 = vunpack.c.h.b16 %v322
    %v633 = vunpack.c.l.b16 %v323
    %v634 = vunpack.c.h.b16 %v323
    %v635 = vunpack.c.l.b16 %v324
    %v636 = vunpack.c.h.b16 %v324
    %v637 = vunpack.c.l.b16 %v325
    %v638 = vunpack.c.h.b16 %v325
    %v639 = vunpack.c.l.b16 %v326
    %v640 = vunpack.c.h.b16 %v326
    %v641 = vunpack.c.l.b16 %v327
    %v642 = vunpack.c.h.b16 %v327
    %v643 = vunpack.c.l.b16 %v328
    %v644 = vunpack.c.h.b16 %v328
    %v645 = vunpack.c.l.b16 %v329
    %v646 = vunpack.c.h.b16 %v329
    %v647 = vunpack.c.l.b16 %v330
    %v648 = vunpack.c.h.b16 %v330
    %v649 = vunpack.c.l.b16 %v331
    %v650 = vunpack.c.h.b16 %v331
    %v651 = vunpack.c.l.b16 %v332
    %v652 = vunpack.c.h.b16 %v332
    %v653 = vunpack.c.l.b16 %v333
    %v654 = vunpack.c.h.b16 %v333
    %v655 = vunpack.c.l.b16 %v334
    %v656 = vunpack.c.h.b16 %v334
    %v657 = vunpack.c.l.b16 %v335
    %v658 = vunpack.c.h.b16 %v335
    %v659 = vunpack.c.l.b16 %v336
    %v660 = vunpack.c.h.b16 %v336
    %v661 = vunpack.c.l.b16 %v337
    %v662 = vunpack.c.h.b16 %v337
    %v663 = vunpack.c.l.b16 %v338
    %v664 = vunpack.c.h.b16 %v338
    %v665 = vunpack.c.l.b16 %v339
    %v666 = vunpack.c.h.b16 %v339
    %v667 = vunpack.c.l.b16 %v340
    %v668 = vunpack.c.h.b16 %v340
    %v669 = vunpack.c.l.b16 %v341
    %v670 = vunpack.c.h.b16 %v341
    %v671 = vunpack.c.l.b16 %v342
    %v672 = vunpack.c.h.b16 %v342
    %v673 = vunpack.c.l.b16 %v343
    %v674 = vunpack.c.h.b16 %v343
    %v675 = vunpack.c.l.b16 %v344
    %v676 = vunpack.c.h.b16 %v344
    %v677 = vunpack.c.l.b16 %v345
    %v678 = vunpack.c.h.b16 %v345
    %v679 = vunpack.c.l.b16 %v346
    %v680 = vunpack.c.h.b16 %v346
    %v681 = vunpack.c.l.b16 %v347
    %v682 = vunpack.c.h.b16 %v347
    %v683 = vunpack.c.l.b16 %v348
    %v684 = vunpack.c.h.b16 %v348
    %v685 = vunpack.c.l.b16 %v349
    %v686 = vunpack.c.h.b16 %v349
    %v687 = vunpack.c.l.b16 %v350
    %v688 = vunpack.c.h.b16 %v350
    %v689 = vunpack.c.l.b16 %v351
    %v690 = vunpack.c.h.b16 %v351
    %v691 = vunpack.c.l.b16 %v352
    %v692 = vunpack.c.h.b16 %v352
    %v693 = vunpack.c.l.b16 %v353
    %v694 = vunpack.c.h.b16 %v353
    %v695 = vunpack.c.l.b16 %v354
    %v696 = vunpack.c.h.b16 %v354
    %v697 = vunpack.c.l.b16 %v355
    %v698 = vunpack.c.h.b16 %v355
    %v699 = vunpack.c.l.b16 %v356
    %v700 = vunpack.c.h.b16 %v356
    %v701 = vunpack.c.l.b16 %v357
    %v702 = vunpack.c.h.b16 %v357
    %v703 = vunpack.c.l.b16 %v358
    %v704 = vunpack.c.h.b16 %v358
    %v705 = vunpack.c.l.b16 %v359
    %v706 = vunpack.c.h.b16 %v359
    %v707 = vunpack.c.l.b16 %v360
    %v708 = vunpack.c.h.b16 %v360
    %v709 = vunpack.c.l.b16 %v361
    %v710 = vunpack.c.h.b16 %v361
    %v711 = vunpack.c.l.b16 %v362
    %v712 = vunpack.c.h.b16 %v362
    %v713 = vunpack.c.l.b16 %v363
    %v714 = vunpack.c.h.b16 %v363
    %v715 = vunpack.c.l.b16 %v364
    %v716 = vunpack.c.h.b16 %v364
    %v717 = vunpack.c.l.b16 %v365
    %v718 = vunpack.c.h.b16 %v365
    %v719 = vunpack.c.l.b16 %v366
    %v720 = vunpack.c.h.b16 %v366
    %v721 = vunpack.c.l.b16 %v367
    %v722 = vunpack.c.h.b16 %v367
    %v723 = vunpack.c.l.b16 %v368
    %v724 = vunpack.c.h.b16 %v368
    %v725 = vunpack.c.l.b16 %v369
    %v726 = vunpack.c.h.b16 %v369
    %v727 = vunpack.c.l.b16 %v370
    %v728 = vunpack.c.h.b16 %v370
    %v729 = vunpack.c.l.b16 %v371
    %v730 = vunpack.c.h.b16 %v371
    %v731 = vunpack.c.l.b16 %v372
    %v732 = vunpack.c.h.b16 %v372
    %v733 = vunpack.c.l.b16 %v373
    %v734 = vunpack.c.h.b16 %v373
    %v735 = vunpack.c.l.b16 %v374
    %v736 = vunpack.c.h.b16 %v374
    %v737 = vunpack.c.l.b16 %v375
    %v738 = vunpack.c.h.b16 %v375
    %v739 = vunpack.c.l.b16 %v376
    %v740 = vunpack.c.h.b16 %v376
    %v741 = vunpack.c.l.b16 %v377
    %v742 = vunpack.c.h.b16 %v377
    %v743 = vunpack.c.l.b16 %v378
    %v744 = vunpack.c.h.b16 %v378
    %v745 = vunpack.c.l.b16 %v379
    %v746 = vunpack.c.h.b16 %v379
    %v747 = vunpack.c.l.b16 %v380
    %v748 = vunpack.c.h.b16 %v380
    %v749 = vunpack.c.l.b16 %v381
    %v750 = vunpack.c.h.b16 %v381
    %v751 = vunpack.c.l.b16 %v382
    %v752 = vunpack.c.h.b16 %v382
    %v753 = vunpack.c.l.b16 %v383
    %v754 = vunpack.c.h.b16 %v383
    %v755 = vunpack.c.l.b16 %v384
    %v756 = vunpack.c.h.b16 %v384
    %v757 = vunpack.c.l.b16 %v385
    %v758 = vunpack.c.h.b16 %v385
    %v759 = vunpack.c.l.b16 %v386
    %v760 = vunpack.c.h.b16 %v386
    %v761 = vunpack.c.l.b16 %v387
    %v762 = vunpack.c.h.b16 %v387
    %v763 = vunpack.c.l.b16 %v388
    %v764 = vunpack.c.h.b16 %v388
    %v765 = vunpack.c.l.b16 %v389
    %v766 = vunpack.c.h.b16 %v389
    %v767 = vunpack.c.l.b16 %v390
    %v768 = vunpack.c.h.b16 %v390
    %v769 = vunpack.c.l.b16 %v391
    %v770 = vunpack.c.h.b16 %v391
    %v771 = vunpack.c.l.b16 %v392
    %v772 = vunpack.c.h.b16 %v392
    %v773 = vunpack.c.l.b16 %v393
    %v774 = vunpack.c.h.b16 %v393
    %v775 = vunpack.c.l.b16 %v394
    %v776 = vunpack.c.h.b16 %v394
    %v777 = vunpack.c.l.b16 %v395
    %v778 = vunpack.c.h.b16 %v395
    %v779 = vunpack.c.l.b16 %v396
    %v780 = vunpack.c.h.b16 %v396
    %v781 = vunpack.c.l.b16 %v397
    %v782 = vunpack.c.h.b16 %v397
    %v783 = vunpack.c.l.b16 %v398
    %v784 = vunpack.c.h.b16 %v398
    %v785 = vunpack.c.l.b16 %v399
    %v786 = vunpack.c.h.b16 %v399
    %v787 = vunpack.c.l.b16 %v400
    %v788 = vunpack.c.h.b16 %v400
    %v789 = vunpack.c.l.b16 %v401
    %v790 = vunpack.c.h.b16 %v401
    %v791 = vunpack.c.l.b16 %v402
    %v792 = vunpack.c.h.b16 %v402
    %v793 = vunpack.c.l.b16 %v403
    %v794 = vunpack.c.h.b16 %v403
    %v795 = vunpack.c.l.b16 %v404
    %v796 = vunpack.c.h.b16 %v404
    %v797 = vunpack.c.l.b16 %v405
    %v798 = vunpack.c.h.b16 %v405
    %v799 = vunpack.c.l.b16 %v406
    %v800 = vunpack.c.h.b16 %v406
    %v801 = vpack.c.b16 %v549, %v545
    %v802 = vpack.c.b16 %v550, %v546
    %v803 = vpack.c.b16 %v551, %v547
    %v804 = vpack.c.b16 %v552, %v548
    %v805 = vpack.c.b16 %v557, %v553
    %v806 = vpack.c.b16 %v558, %v554
    %v807 = vpack.c.b16 %v559, %v555
    %v808 = vpack.c.b16 %v560, %v556
    %v809 = vpack.c.b16 %v565, %v561
    %v810 = vpack.c.b16 %v566, %v562
    %v811 = vpack.c.b16 %v567, %v563
    %v812 = vpack.c.b16 %v568, %v564
    %v813 = vpack.c.b16 %v573, %v569
    %v814 = vpack.c.b16 %v574, %v570
    %v815 = vpack.c.b16 %v575, %v571
    %v816 = vpack.c.b16 %v576, %v572
    %v817 = vpack.c.b16 %v581, %v577
    %v818 = vpack.c.b16 %v582, %v578
    %v819 = vpack.c.b16 %v583, %v579
    %v820 = vpack.c.b16 %v584, %v580
    %v821 = vpack.c.b16 %v589, %v585
    %v822 = vpack.c.b16 %v590, %v586
    %v823 = vpack.c.b16 %v591, %v587
    %v824 = vpack.c.b16 %v592, %v588
    %v825 = vpack.c.b16 %v597, %v593
    %v826 = vpack.c.b16 %v598, %v594
    %v827 = vpack.c.b16 %v599, %v595
    %v828 = vpack.c.b16 %v600, %v596
    %v829 = vpack.c.b16 %v605, %v601
    %v830 = vpack.c.b16 %v606, %v602
    %v831 = vpack.c.b16 %v607, %v603
    %v832 = vpack.c.b16 %v608, %v604
    %v833 = vpack.c.b16 %v613, %v609
    %v834 = vpack.c.b16 %v614, %v610
    %v835 = vpack.c.b16 %v615, %v611
    %v836 = vpack.c.b16 %v616, %v612
    %v837 = vpack.c.b16 %v621, %v617
    %v838 = vpack.c.b16 %v622, %v618
    %v839 = vpack.c.b16 %v623, %v619
    %v840 = vpack.c.b16 %v624, %v620
    %v841 = vpack.c.b16 %v629, %v625
    %v842 = vpack.c.b16 %v630, %v626
    %v843 = vpack.c.b16 %v631, %v627
    %v844 = vpack.c.b16 %v632, %v628
    %v845 = vpack.c.b16 %v637, %v633
    %v846 = vpack.c.b16 %v638, %v634
    %v847 = vpack.c.b16 %v639, %v635
    %v848 = vpack.c.b16 %v640, %v636
    %v849 = vpack.c.b16 %v645, %v641
    %v850 = vpack.c.b16 %v646, %v642
    %v851 = vpack.c.b16 %v647, %v643
    %v852 = vpack.c.b16 %v648, %v644
    %v853 = vpack.c.b16 %v653, %v649
    %v854 = vpack.c.b16 %v654, %v650
    %v855 = vpack.c.b16 %v655, %v651
    %v856 = vpack.c.b16 %v656, %v652
    %v857 = vpack.c.b16 %v661, %v657
    %v858 = vpack.c.b16 %v662, %v658
    %v859 = vpack.c.b16 %v663, %v659
    %v860 = vpack.c.b16 %v664, %v660
    %v861 = vpack.c.b16 %v669, %v665
    %v862 = vpack.c.b16 %v670, %v666
    %v863 = vpack.c.b16 %v671, %v667
    %v864 = vpack.c.b16 %v672, %v668
    %v865 = vpack.c.b16 %v677, %v673
    %v866 = vpack.c.b16 %v678, %v674
    %v867 = vpack.c.b16 %v679, %v675
    %v868 = vpack.c.b16 %v680, %v676
    %v869 = vpack.c.b16 %v685, %v681
    %v870 = vpack.c.b16 %v686, %v682
    %v871 = vpack.c.b16 %v687, %v683
    %v872 = vpack.c.b16 %v688, %v684
    %v873 = vpack.c.b16 %v693, %v689
    %v874 = vpack.c.b16 %v694, %v690
    %v875 = vpack.c.b16 %v695, %v691
    %v876 = vpack.c.b16 %v696, %v692
    %v877 = vpack.c.b16 %v701, %v697
    %v878 = vpack.c.b16 %v702, %v698
    %v879 = vpack.c.b16 %v703, %v699
    %v880 = vpack.c.b16 %v704, %v700
    %v881 = vpack.c.b16 %v709, %v705
    %v882 = vpack.c.b16 %v710, %v706
    %v883 = vpack.c.b16 %v711, %v707
    %v884 = vpack.c.b16 %v712, %v708
    %v885 = vpack.c.b16 %v717, %v713
    %v886 = vpack.c.b16 %v718, %v714
    %v887 = vpack.c.b16 %v719, %v715
    %v888 = vpack.c.b16 %v720, %v716
    %v889 = vpack.c.b16 %v725, %v721
    %v890 = vpack.c.b16 %v726, %v722
    %v891 = vpack.c.b16 %v727, %v723
    %v892 = vpack.c.b16 %v728, %v724
    %v893 = vpack.c.b16 %v733, %v729
    %v894 = vpack.c.b16 %v734, %v730
    %v895 = vpack.c.b16 %v735, %v731
    %v896 = vpack.c.b16 %v736, %v732
    %v897 = vpack.c.b16 %v741, %v737
    %v898 = vpack.c.b16 %v742, %v738
    %v899 = vpack.c.b16 %v743, %v739
    %v900 = vpack.c.b16 %v744, %v740
    %v901 = vpack.c.b16 %v749, %v745
    %v902 = vpack.c.b16 %v750, %v746
    %v903 = vpack.c.b16 %v751, %v747
    %v904 = vpack.c.b16 %v752, %v748
    %v905 = vpack.c.b16 %v757, %v753
    %v906 = vpack.c.b16 %v758, %v754
    %v907 = vpack.c.b16 %v759, %v755
    %v908 = vpack.c.b16 %v760, %v756
    %v909 = vpack.c.b16 %v765, %v761
    %v910 = vpack.c.b16 %v766, %v762
    %v911 = vpack.c.b16 %v767, %v763
    %v912 = vpack.c.b16 %v768, %v764
    %v913 = vpack.c.b16 %v773, %v769
    %v914 = vpack.c.b16 %v774, %v770
    %v915 = vpack.c.b16 %v775, %v771
    %v916 = vpack.c.b16 %v776, %v772
    %v917 = vpack.c.b16 %v781, %v777
    %v918 = vpack.c.b16 %v782, %v778
    %v919 = vpack.c.b16 %v783, %v779
    %v920 = vpack.c.b16 %v784, %v780
    %v921 = vpack.c.b16 %v789, %v785
    %v922 = vpack.c.b16 %v790, %v786
    %v923 = vpack.c.b16 %v791, %v787
    %v924 = vpack.c.b16 %v792, %v788
    %v925 = vpack.c.b16 %v797, %v793
    %v926 = vpack.c.b16 %v798, %v794
    %v927 = vpack.c.b16 %v799, %v795
    %v928 = vpack.c.b16 %v800, %v796
    %1057 = vmatpush.bf16.msra.mxu0 %v829
    %1058 = vmatpush.bf16.msra.mxu0 %v825
    %1059 = vmatpush.bf16.msra.mxu0 %v821
    %1060 = vmatpush.bf16.msra.mxu0 %v817
    %1061 = vmatpush.bf16.msra.mxu0 %v813
    %1062 = vmatpush.bf16.msra.mxu0 %v809
    %1063 = vmatpush.bf16.msra.mxu0 %v805
    %1064 = vmatpush.bf16.msra.mxu0 %v801
    %1065 = vmatmul.bf16.gmra.mxu0 %v275
    %v1066 = vpop.f32.mrf.mxu0
    %v1067 = vadd.f32 %v409, %v1066
    %v1068 = vpop.f32.mrf.mxu0
    %1069 = vdwg.mxu0
    %1070 = vmatpush.bf16.msra.mxu0 %v861
    %1071 = vmatpush.bf16.msra.mxu0 %v857
    %1072 = vmatpush.bf16.msra.mxu0 %v853
    %1073 = vmatpush.bf16.msra.mxu0 %v849
    %1074 = vmatpush.bf16.msra.mxu0 %v845
    %1075 = vmatpush.bf16.msra.mxu0 %v841
    %1076 = vmatpush.bf16.msra.mxu0 %v837
    %1077 = vmatpush.bf16.msra.mxu0 %v833
    %1078 = vmatmul.bf16.gmra.mxu0 %v276
    %v1079 = vpop.f32.mrf.mxu0
    %v1080 = vadd.f32 %v1067, %v1079
    %v1081 = vpop.f32.mrf.mxu0
    %1082 = vdwg.mxu0
    %1083 = vmatpush.bf16.msra.mxu0 %v893
    %1084 = vmatpush.bf16.msra.mxu0 %v889
    %1085 = vmatpush.bf16.msra.mxu0 %v885
    %1086 = vmatpush.bf16.msra.mxu0 %v881
    %1087 = vmatpush.bf16.msra.mxu0 %v877
    %1088 = vmatpush.bf16.msra.mxu0 %v873
    %1089 = vmatpush.bf16.msra.mxu0 %v869
    %1090 = vmatpush.bf16.msra.mxu0 %v865
    %1091 = vmatmul.bf16.gmra.mxu0 %v277
    %v1092 = vpop.f32.mrf.mxu0
    %v1093 = vadd.f32 %v1080, %v1092
    %v1094 = vpop.f32.mrf.mxu0
    %1095 = vdwg.mxu0
    %1096 = vmatpush.bf16.msra.mxu0 %v925
    %1097 = vmatpush.bf16.msra.mxu0 %v921
    %1098 = vmatpush.bf16.msra.mxu0 %v917
    %1099 = vmatpush.bf16.msra.mxu0 %v913
    %1100 = vmatpush.bf16.msra.mxu0 %v909
    %1101 = vmatpush.bf16.msra.mxu0 %v905
    %1102 = vmatpush.bf16.msra.mxu0 %v901
    %1103 = vmatpush.bf16.msra.mxu0 %v897
    %1104 = vmatmul.bf16.gmra.mxu0 %v278
    %v1105 = vpop.f32.mrf.mxu0
    %v1106 = vadd.f32 %v1093, %v1105
    %v1107 = vpop.f32.mrf.mxu0
    %1108 = vdwg.mxu0
    %1109 = vmatpush.bf16.msra.mxu0 %v830
    %1110 = vmatpush.bf16.msra.mxu0 %v826
    %1111 = vmatpush.bf16.msra.mxu0 %v822
    %1112 = vmatpush.bf16.msra.mxu0 %v818
    %1113 = vmatpush.bf16.msra.mxu0 %v814
    %1114 = vmatpush.bf16.msra.mxu0 %v810
    %1115 = vmatpush.bf16.msra.mxu0 %v806
    %1116 = vmatpush.bf16.msra.mxu0 %v802
    %1117 = vmatmul.bf16.gmra.mxu0 %v275
    %v1118 = vpop.f32.mrf.mxu0
    %v1119 = vadd.f32 %v410, %v1118
    %v1120 = vpop.f32.mrf.mxu0
    %1121 = vdwg.mxu0
    %1122 = vmatpush.bf16.msra.mxu0 %v862
    %1123 = vmatpush.bf16.msra.mxu0 %v858
    %1124 = vmatpush.bf16.msra.mxu0 %v854
    %1125 = vmatpush.bf16.msra.mxu0 %v850
    %1126 = vmatpush.bf16.msra.mxu0 %v846
    %1127 = vmatpush.bf16.msra.mxu0 %v842
    %1128 = vmatpush.bf16.msra.mxu0 %v838
    %1129 = vmatpush.bf16.msra.mxu0 %v834
    %1130 = vmatmul.bf16.gmra.mxu0 %v276
    %v1131 = vpop.f32.mrf.mxu0
    %v1132 = vadd.f32 %v1119, %v1131
    %v1133 = vpop.f32.mrf.mxu0
    %1134 = vdwg.mxu0
    %1135 = vmatpush.bf16.msra.mxu0 %v894
    %1136 = vmatpush.bf16.msra.mxu0 %v890
    %1137 = vmatpush.bf16.msra.mxu0 %v886
    %1138 = vmatpush.bf16.msra.mxu0 %v882
    %1139 = vmatpush.bf16.msra.mxu0 %v878
    %1140 = vmatpush.bf16.msra.mxu0 %v874
    %1141 = vmatpush.bf16.msra.mxu0 %v870
    %1142 = vmatpush.bf16.msra.mxu0 %v866
    %1143 = vmatmul.bf16.gmra.mxu0 %v277
    %v1144 = vpop.f32.mrf.mxu0
    %v1145 = vadd.f32 %v1132, %v1144
    %v1146 = vpop.f32.mrf.mxu0
    %1147 = vdwg.mxu0
    %1148 = vmatpush.bf16.msra.mxu0 %v926
    %1149 = vmatpush.bf16.msra.mxu0 %v922
    %1150 = vmatpush.bf16.msra.mxu0 %v918
    %1151 = vmatpush.bf16.msra.mxu0 %v914
    %1152 = vmatpush.bf16.msra.mxu0 %v910
    %1153 = vmatpush.bf16.msra.mxu0 %v906
    %1154 = vmatpush.bf16.msra.mxu0 %v902
    %1155 = vmatpush.bf16.msra.mxu0 %v898
    %1156 = vmatmul.bf16.gmra.mxu0 %v278
    %v1157 = vpop.f32.mrf.mxu0
    %v1158 = vadd.f32 %v1145, %v1157
    %v1159 = vpop.f32.mrf.mxu0
    %1160 = vdwg.mxu0
    %1161 = vmatpush.bf16.msra.mxu0 %v831
    %1162 = vmatpush.bf16.msra.mxu0 %v827
    %1163 = vmatpush.bf16.msra.mxu0 %v823
    %1164 = vmatpush.bf16.msra.mxu0 %v819
    %1165 = vmatpush.bf16.msra.mxu0 %v815
    %1166 = vmatpush.bf16.msra.mxu0 %v811
    %1167 = vmatpush.bf16.msra.mxu0 %v807
    %1168 = vmatpush.bf16.msra.mxu0 %v803
    %1169 = vmatmul.bf16.gmra.mxu0 %v275
    %v1170 = vpop.f32.mrf.mxu0
    %v1171 = vadd.f32 %v411, %v1170
    %v1172 = vpop.f32.mrf.mxu0
    %1173 = vdwg.mxu0
    %1174 = vmatpush.bf16.msra.mxu0 %v863
    %1175 = vmatpush.bf16.msra.mxu0 %v859
    %1176 = vmatpush.bf16.msra.mxu0 %v855
    %1177 = vmatpush.bf16.msra.mxu0 %v851
    %1178 = vmatpush.bf16.msra.mxu0 %v847
    %1179 = vmatpush.bf16.msra.mxu0 %v843
    %1180 = vmatpush.bf16.msra.mxu0 %v839
    %1181 = vmatpush.bf16.msra.mxu0 %v835
    %1182 = vmatmul.bf16.gmra.mxu0 %v276
    %v1183 = vpop.f32.mrf.mxu0
    %v1184 = vadd.f32 %v1171, %v1183
    %v1185 = vpop.f32.mrf.mxu0
    %1186 = vdwg.mxu0
    %1187 = vmatpush.bf16.msra.mxu0 %v895
    %1188 = vmatpush.bf16.msra.mxu0 %v891
    %1189 = vmatpush.bf16.msra.mxu0 %v887
    %1190 = vmatpush.bf16.msra.mxu0 %v883
    %1191 = vmatpush.bf16.msra.mxu0 %v879
    %1192 = vmatpush.bf16.msra.mxu0 %v875
    %1193 = vmatpush.bf16.msra.mxu0 %v871
    %1194 = vmatpush.bf16.msra.mxu0 %v867
    %1195 = vmatmul.bf16.gmra.mxu0 %v277
    %v1196 = vpop.f32.mrf.mxu0
    %v1197 = vadd.f32 %v1184, %v1196
    %v1198 = vpop.f32.mrf.mxu0
    %1199 = vdwg.mxu0
    %1200 = vmatpush.bf16.msra.mxu0 %v927
    %1201 = vmatpush.bf16.msra.mxu0 %v923
    %1202 = vmatpush.bf16.msra.mxu0 %v919
    %1203 = vmatpush.bf16.msra.mxu0 %v915
    %1204 = vmatpush.bf16.msra.mxu0 %v911
    %1205 = vmatpush.bf16.msra.mxu0 %v907
    %1206 = vmatpush.bf16.msra.mxu0 %v903
    %1207 = vmatpush.bf16.msra.mxu0 %v899
    %1208 = vmatmul.bf16.gmra.mxu0 %v278
    %v1209 = vpop.f32.mrf.mxu0
    %v1210 = vadd.f32 %v1197, %v1209
    %v1211 = vpop.f32.mrf.mxu0
    %1212 = vdwg.mxu0
    %1213 = vmatpush.bf16.msra.mxu0 %v832
    %1214 = vmatpush.bf16.msra.mxu0 %v828
    %1215 = vmatpush.bf16.msra.mxu0 %v824
    %1216 = vmatpush.bf16.msra.mxu0 %v820
    %1217 = vmatpush.bf16.msra.mxu0 %v816
    %1218 = vmatpush.bf16.msra.mxu0 %v812
    %1219 = vmatpush.bf16.msra.mxu0 %v808
    %1220 = vmatpush.bf16.msra.mxu0 %v804
    %1221 = vmatmul.bf16.gmra.mxu0 %v275
    %v1222 = vpop.f32.mrf.mxu0
    %v1223 = vadd.f32 %v412, %v1222
    %v1224 = vpop.f32.mrf.mxu0
    %1225 = vdwg.mxu0
    %1226 = vmatpush.bf16.msra.mxu0 %v864
    %1227 = vmatpush.bf16.msra.mxu0 %v860
    %1228 = vmatpush.bf16.msra.mxu0 %v856
    %1229 = vmatpush.bf16.msra.mxu0 %v852
    %1230 = vmatpush.bf16.msra.mxu0 %v848
    %1231 = vmatpush.bf16.msra.mxu0 %v844
    %1232 = vmatpush.bf16.msra.mxu0 %v840
    %1233 = vmatpush.bf16.msra.mxu0 %v836
    %1234 = vmatmul.bf16.gmra.mxu0 %v276
    %v1235 = vpop.f32.mrf.mxu0
    %v1236 = vadd.f32 %v1223, %v1235
    %v1237 = vpop.f32.mrf.mxu0
    %1238 = vdwg.mxu0
    %1239 = vmatpush.bf16.msra.mxu0 %v896
    %1240 = vmatpush.bf16.msra.mxu0 %v892
    %1241 = vmatpush.bf16.msra.mxu0 %v888
    %1242 = vmatpush.bf16.msra.mxu0 %v884
    %1243 = vmatpush.bf16.msra.mxu0 %v880
    %1244 = vmatpush.bf16.msra.mxu0 %v876
    %1245 = vmatpush.bf16.msra.mxu0 %v872
    %1246 = vmatpush.bf16.msra.mxu0 %v868
    %1247 = vmatmul.bf16.gmra.mxu0 %v277
    %v1248 = vpop.f32.mrf.mxu0
    %v1249 = vadd.f32 %v1236, %v1248
    %v1250 = vpop.f32.mrf.mxu0
    %1251 = vdwg.mxu0
    %1252 = vmatpush.bf16.msra.mxu0 %v928
    %1253 = vmatpush.bf16.msra.mxu0 %v924
    %1254 = vmatpush.bf16.msra.mxu0 %v920
    %1255 = vmatpush.bf16.msra.mxu0 %v916
    %1256 = vmatpush.bf16.msra.mxu0 %v912
    %1257 = vmatpush.bf16.msra.mxu0 %v908
    %1258 = vmatpush.bf16.msra.mxu0 %v904
    %1259 = vmatpush.bf16.msra.mxu0 %v900
    %1260 = vmatmul.bf16.gmra.mxu0 %v278
    %v1261 = vpop.f32.mrf.mxu0
    %v1262 = vadd.f32 %v1249, %v1261
    %v1263 = vpop.f32.mrf.mxu0
    %1264 = vdwg.mxu0
    %v1265 = vmax.f32 %v1106, 0.0
    %v1266 = vmax.f32 %v1158, 0.0
    %v1267 = vmax.f32 %v1210, 0.0
    %v1268 = vmax.f32 %v1262, 0.0
    %v1269 = vpack.c.bf16 %v1265, %v1265
    %v1270 = vpack.c.bf16 %v1266, %v1266
    %v1271 = vpack.c.bf16 %v1267, %v1267
    %v1272 = vpack.c.bf16 %v1268, %v1268
    %v1273 = vld [vmem:[#allocation14] sm:$0xff]
    %v1274 = vld [vmem:[#allocation14 + $0x8] sm:$0xff]
    %v1275 = vld [vmem:[#allocation14 + $0x10] sm:$0xff]
    %v1276 = vld [vmem:[#allocation14 + $0x18] sm:$0xff]
    %v1277 = vld [vmem:[#allocation14 + $0x20] sm:$0xff]
    %v1278 = vld [vmem:[#allocation14 + $0x28] sm:$0xff]
    %v1279 = vld [vmem:[#allocation14 + $0x30] sm:$0xff]
    %v1280 = vld [vmem:[#allocation14 + $0x38] sm:$0xff]
    %v1281 = vld [vmem:[#allocation14 + $0x40] sm:$0xff]
    %v1282 = vld [vmem:[#allocation14 + $0x48] sm:$0xff]
    %v1283 = vld [vmem:[#allocation14 + $0x50] sm:$0xff]
    %v1284 = vld [vmem:[#allocation14 + $0x58] sm:$0xff]
    %v1285 = vld [vmem:[#allocation14 + $0x60] sm:$0xff]
    %v1286 = vld [vmem:[#allocation14 + $0x68] sm:$0xff]
    %v1287 = vld [vmem:[#allocation14 + $0x70] sm:$0xff]
    %v1288 = vld [vmem:[#allocation14 + $0x78] sm:$0xff]
    %v1289 = vld [vmem:[#allocation14 + $0x80] sm:$0xff]
    %v1290 = vld [vmem:[#allocation14 + $0x88] sm:$0xff]
    %v1291 = vld [vmem:[#allocation14 + $0x90] sm:$0xff]
    %v1292 = vld [vmem:[#allocation14 + $0x98] sm:$0xff]
    %v1293 = vld [vmem:[#allocation14 + $0xa0] sm:$0xff]
    %v1294 = vld [vmem:[#allocation14 + $0xa8] sm:$0xff]
    %v1295 = vld [vmem:[#allocation14 + $0xb0] sm:$0xff]
    %v1296 = vld [vmem:[#allocation14 + $0xb8] sm:$0xff]
    %v1297 = vld [vmem:[#allocation14 + $0xc0] sm:$0xff]
    %v1298 = vld [vmem:[#allocation14 + $0xc8] sm:$0xff]
    %v1299 = vld [vmem:[#allocation14 + $0xd0] sm:$0xff]
    %v1300 = vld [vmem:[#allocation14 + $0xd8] sm:$0xff]
    %v1301 = vld [vmem:[#allocation14 + $0xe0] sm:$0xff]
    %v1302 = vld [vmem:[#allocation14 + $0xe8] sm:$0xff]
    %v1303 = vld [vmem:[#allocation14 + $0xf0] sm:$0xff]
    %v1304 = vld [vmem:[#allocation14 + $0xf8] sm:$0xff]
    %v1305 = vld [vmem:[#allocation14 + $0x100] sm:$0xff]
    %v1306 = vld [vmem:[#allocation14 + $0x108] sm:$0xff]
    %v1307 = vld [vmem:[#allocation14 + $0x110] sm:$0xff]
    %v1308 = vld [vmem:[#allocation14 + $0x118] sm:$0xff]
    %v1309 = vld [vmem:[#allocation14 + $0x120] sm:$0xff]
    %v1310 = vld [vmem:[#allocation14 + $0x128] sm:$0xff]
    %v1311 = vld [vmem:[#allocation14 + $0x130] sm:$0xff]
    %v1312 = vld [vmem:[#allocation14 + $0x138] sm:$0xff]
    %v1313 = vld [vmem:[#allocation14 + $0x140] sm:$0xff]
    %v1314 = vld [vmem:[#allocation14 + $0x148] sm:$0xff]
    %v1315 = vld [vmem:[#allocation14 + $0x150] sm:$0xff]
    %v1316 = vld [vmem:[#allocation14 + $0x158] sm:$0xff]
    %v1317 = vld [vmem:[#allocation14 + $0x160] sm:$0xff]
    %v1318 = vld [vmem:[#allocation14 + $0x168] sm:$0xff]
    %v1319 = vld [vmem:[#allocation14 + $0x170] sm:$0xff]
    %v1320 = vld [vmem:[#allocation14 + $0x178] sm:$0xff]
    %v1321 = vld [vmem:[#allocation14 + $0x180] sm:$0xff]
    %v1322 = vld [vmem:[#allocation14 + $0x188] sm:$0xff]
    %v1323 = vld [vmem:[#allocation14 + $0x190] sm:$0xff]
    %v1324 = vld [vmem:[#allocation14 + $0x198] sm:$0xff]
    %v1325 = vld [vmem:[#allocation14 + $0x1a0] sm:$0xff]
    %v1326 = vld [vmem:[#allocation14 + $0x1a8] sm:$0xff]
    %v1327 = vld [vmem:[#allocation14 + $0x1b0] sm:$0xff]
    %v1328 = vld [vmem:[#allocation14 + $0x1b8] sm:$0xff]
    %v1329 = vld [vmem:[#allocation14 + $0x1c0] sm:$0xff]
    %v1330 = vld [vmem:[#allocation14 + $0x1c8] sm:$0xff]
    %v1331 = vld [vmem:[#allocation14 + $0x1d0] sm:$0xff]
    %v1332 = vld [vmem:[#allocation14 + $0x1d8] sm:$0xff]
    %v1333 = vld [vmem:[#allocation14 + $0x1e0] sm:$0xff]
    %v1334 = vld [vmem:[#allocation14 + $0x1e8] sm:$0xff]
    %v1335 = vld [vmem:[#allocation14 + $0x1f0] sm:$0xff]
    %v1336 = vld [vmem:[#allocation14 + $0x1f8] sm:$0xff]
    %v1337 = vld [vmem:[#allocation14 + $0x200] sm:$0xff]
    %v1338 = vld [vmem:[#allocation14 + $0x208] sm:$0xff]
    %v1339 = vld [vmem:[#allocation14 + $0x210] sm:$0xff]
    %v1340 = vld [vmem:[#allocation14 + $0x218] sm:$0xff]
    %v1341 = vld [vmem:[#allocation14 + $0x220] sm:$0xff]
    %v1342 = vld [vmem:[#allocation14 + $0x228] sm:$0xff]
    %v1343 = vld [vmem:[#allocation14 + $0x230] sm:$0xff]
    %v1344 = vld [vmem:[#allocation14 + $0x238] sm:$0xff]
    %v1345 = vld [vmem:[#allocation14 + $0x240] sm:$0xff]
    %v1346 = vld [vmem:[#allocation14 + $0x248] sm:$0xff]
    %v1347 = vld [vmem:[#allocation14 + $0x250] sm:$0xff]
    %v1348 = vld [vmem:[#allocation14 + $0x258] sm:$0xff]
    %v1349 = vld [vmem:[#allocation14 + $0x260] sm:$0xff]
    %v1350 = vld [vmem:[#allocation14 + $0x268] sm:$0xff]
    %v1351 = vld [vmem:[#allocation14 + $0x270] sm:$0xff]
    %v1352 = vld [vmem:[#allocation14 + $0x278] sm:$0xff]
    %v1353 = vld [vmem:[#allocation14 + $0x280] sm:$0xff]
    %v1354 = vld [vmem:[#allocation14 + $0x288] sm:$0xff]
    %v1355 = vld [vmem:[#allocation14 + $0x290] sm:$0xff]
    %v1356 = vld [vmem:[#allocation14 + $0x298] sm:$0xff]
    %v1357 = vld [vmem:[#allocation14 + $0x2a0] sm:$0xff]
    %v1358 = vld [vmem:[#allocation14 + $0x2a8] sm:$0xff]
    %v1359 = vld [vmem:[#allocation14 + $0x2b0] sm:$0xff]
    %v1360 = vld [vmem:[#allocation14 + $0x2b8] sm:$0xff]
    %v1361 = vld [vmem:[#allocation14 + $0x2c0] sm:$0xff]
    %v1362 = vld [vmem:[#allocation14 + $0x2c8] sm:$0xff]
    %v1363 = vld [vmem:[#allocation14 + $0x2d0] sm:$0xff]
    %v1364 = vld [vmem:[#allocation14 + $0x2d8] sm:$0xff]
    %v1365 = vld [vmem:[#allocation14 + $0x2e0] sm:$0xff]
    %v1366 = vld [vmem:[#allocation14 + $0x2e8] sm:$0xff]
    %v1367 = vld [vmem:[#allocation14 + $0x2f0] sm:$0xff]
    %v1368 = vld [vmem:[#allocation14 + $0x2f8] sm:$0xff]
    %v1369 = vld [vmem:[#allocation14 + $0x300] sm:$0xff]
    %v1370 = vld [vmem:[#allocation14 + $0x308] sm:$0xff]
    %v1371 = vld [vmem:[#allocation14 + $0x310] sm:$0xff]
    %v1372 = vld [vmem:[#allocation14 + $0x318] sm:$0xff]
    %v1373 = vld [vmem:[#allocation14 + $0x320] sm:$0xff]
    %v1374 = vld [vmem:[#allocation14 + $0x328] sm:$0xff]
    %v1375 = vld [vmem:[#allocation14 + $0x330] sm:$0xff]
    %v1376 = vld [vmem:[#allocation14 + $0x338] sm:$0xff]
    %v1377 = vld [vmem:[#allocation14 + $0x340] sm:$0xff]
    %v1378 = vld [vmem:[#allocation14 + $0x348] sm:$0xff]
    %v1379 = vld [vmem:[#allocation14 + $0x350] sm:$0xff]
    %v1380 = vld [vmem:[#allocation14 + $0x358] sm:$0xff]
    %v1381 = vld [vmem:[#allocation14 + $0x360] sm:$0xff]
    %v1382 = vld [vmem:[#allocation14 + $0x368] sm:$0xff]
    %v1383 = vld [vmem:[#allocation14 + $0x370] sm:$0xff]
    %v1384 = vld [vmem:[#allocation14 + $0x378] sm:$0xff]
    %v1385 = vld [vmem:[#allocation14 + $0x380] sm:$0xff]
    %v1386 = vld [vmem:[#allocation14 + $0x388] sm:$0xff]
    %v1387 = vld [vmem:[#allocation14 + $0x390] sm:$0xff]
    %v1388 = vld [vmem:[#allocation14 + $0x398] sm:$0xff]
    %v1389 = vld [vmem:[#allocation14 + $0x3a0] sm:$0xff]
    %v1390 = vld [vmem:[#allocation14 + $0x3a8] sm:$0xff]
    %v1391 = vld [vmem:[#allocation14 + $0x3b0] sm:$0xff]
    %v1392 = vld [vmem:[#allocation14 + $0x3b8] sm:$0xff]
    %v1393 = vld [vmem:[#allocation14 + $0x3c0] sm:$0xff]
    %v1394 = vld [vmem:[#allocation14 + $0x3c8] sm:$0xff]
    %v1395 = vld [vmem:[#allocation14 + $0x3d0] sm:$0xff]
    %v1396 = vld [vmem:[#allocation14 + $0x3d8] sm:$0xff]
    %v1397 = vld [vmem:[#allocation14 + $0x3e0] sm:$0xff]
    %v1398 = vld [vmem:[#allocation14 + $0x3e8] sm:$0xff]
    %v1399 = vld [vmem:[#allocation14 + $0x3f0] sm:$0xff]
    %v1400 = vld [vmem:[#allocation14 + $0x3f8] sm:$0xff]
    %v1401 = vld [vmem:[%s9] sm:$0xf]
    %v1403 = vperm.slane %v1401, 0
    %v1404 = vperm.slane %v1401, 1
    %v1405 = vperm.slane %v1401, 2
    %v1406 = vperm.slane %v1401, 3
    %v1539 = vunpack.c.l.b16 %v1273
    %v1540 = vunpack.c.h.b16 %v1273
    %v1541 = vunpack.c.l.b16 %v1274
    %v1542 = vunpack.c.h.b16 %v1274
    %v1543 = vunpack.c.l.b16 %v1275
    %v1544 = vunpack.c.h.b16 %v1275
    %v1545 = vunpack.c.l.b16 %v1276
    %v1546 = vunpack.c.h.b16 %v1276
    %v1547 = vunpack.c.l.b16 %v1277
    %v1548 = vunpack.c.h.b16 %v1277
    %v1549 = vunpack.c.l.b16 %v1278
    %v1550 = vunpack.c.h.b16 %v1278
    %v1551 = vunpack.c.l.b16 %v1279
    %v1552 = vunpack.c.h.b16 %v1279
    %v1553 = vunpack.c.l.b16 %v1280
    %v1554 = vunpack.c.h.b16 %v1280
    %v1555 = vunpack.c.l.b16 %v1281
    %v1556 = vunpack.c.h.b16 %v1281
    %v1557 = vunpack.c.l.b16 %v1282
    %v1558 = vunpack.c.h.b16 %v1282
    %v1559 = vunpack.c.l.b16 %v1283
    %v1560 = vunpack.c.h.b16 %v1283
    %v1561 = vunpack.c.l.b16 %v1284
    %v1562 = vunpack.c.h.b16 %v1284
    %v1563 = vunpack.c.l.b16 %v1285
    %v1564 = vunpack.c.h.b16 %v1285
    %v1565 = vunpack.c.l.b16 %v1286
    %v1566 = vunpack.c.h.b16 %v1286
    %v1567 = vunpack.c.l.b16 %v1287
    %v1568 = vunpack.c.h.b16 %v1287
    %v1569 = vunpack.c.l.b16 %v1288
    %v1570 = vunpack.c.h.b16 %v1288
    %v1571 = vunpack.c.l.b16 %v1289
    %v1572 = vunpack.c.h.b16 %v1289
    %v1573 = vunpack.c.l.b16 %v1290
    %v1574 = vunpack.c.h.b16 %v1290
    %v1575 = vunpack.c.l.b16 %v1291
    %v1576 = vunpack.c.h.b16 %v1291
    %v1577 = vunpack.c.l.b16 %v1292
    %v1578 = vunpack.c.h.b16 %v1292
    %v1579 = vunpack.c.l.b16 %v1293
    %v1580 = vunpack.c.h.b16 %v1293
    %v1581 = vunpack.c.l.b16 %v1294
    %v1582 = vunpack.c.h.b16 %v1294
    %v1583 = vunpack.c.l.b16 %v1295
    %v1584 = vunpack.c.h.b16 %v1295
    %v1585 = vunpack.c.l.b16 %v1296
    %v1586 = vunpack.c.h.b16 %v1296
    %v1587 = vunpack.c.l.b16 %v1297
    %v1588 = vunpack.c.h.b16 %v1297
    %v1589 = vunpack.c.l.b16 %v1298
    %v1590 = vunpack.c.h.b16 %v1298
    %v1591 = vunpack.c.l.b16 %v1299
    %v1592 = vunpack.c.h.b16 %v1299
    %v1593 = vunpack.c.l.b16 %v1300
    %v1594 = vunpack.c.h.b16 %v1300
    %v1595 = vunpack.c.l.b16 %v1301
    %v1596 = vunpack.c.h.b16 %v1301
    %v1597 = vunpack.c.l.b16 %v1302
    %v1598 = vunpack.c.h.b16 %v1302
    %v1599 = vunpack.c.l.b16 %v1303
    %v1600 = vunpack.c.h.b16 %v1303
    %v1601 = vunpack.c.l.b16 %v1304
    %v1602 = vunpack.c.h.b16 %v1304
    %v1603 = vunpack.c.l.b16 %v1305
    %v1604 = vunpack.c.h.b16 %v1305
    %v1605 = vunpack.c.l.b16 %v1306
    %v1606 = vunpack.c.h.b16 %v1306
    %v1607 = vunpack.c.l.b16 %v1307
    %v1608 = vunpack.c.h.b16 %v1307
    %v1609 = vunpack.c.l.b16 %v1308
    %v1610 = vunpack.c.h.b16 %v1308
    %v1611 = vunpack.c.l.b16 %v1309
    %v1612 = vunpack.c.h.b16 %v1309
    %v1613 = vunpack.c.l.b16 %v1310
    %v1614 = vunpack.c.h.b16 %v1310
    %v1615 = vunpack.c.l.b16 %v1311
    %v1616 = vunpack.c.h.b16 %v1311
    %v1617 = vunpack.c.l.b16 %v1312
    %v1618 = vunpack.c.h.b16 %v1312
    %v1619 = vunpack.c.l.b16 %v1313
    %v1620 = vunpack.c.h.b16 %v1313
    %v1621 = vunpack.c.l.b16 %v1314
    %v1622 = vunpack.c.h.b16 %v1314
    %v1623 = vunpack.c.l.b16 %v1315
    %v1624 = vunpack.c.h.b16 %v1315
    %v1625 = vunpack.c.l.b16 %v1316
    %v1626 = vunpack.c.h.b16 %v1316
    %v1627 = vunpack.c.l.b16 %v1317
    %v1628 = vunpack.c.h.b16 %v1317
    %v1629 = vunpack.c.l.b16 %v1318
    %v1630 = vunpack.c.h.b16 %v1318
    %v1631 = vunpack.c.l.b16 %v1319
    %v1632 = vunpack.c.h.b16 %v1319
    %v1633 = vunpack.c.l.b16 %v1320
    %v1634 = vunpack.c.h.b16 %v1320
    %v1635 = vunpack.c.l.b16 %v1321
    %v1636 = vunpack.c.h.b16 %v1321
    %v1637 = vunpack.c.l.b16 %v1322
    %v1638 = vunpack.c.h.b16 %v1322
    %v1639 = vunpack.c.l.b16 %v1323
    %v1640 = vunpack.c.h.b16 %v1323
    %v1641 = vunpack.c.l.b16 %v1324
    %v1642 = vunpack.c.h.b16 %v1324
    %v1643 = vunpack.c.l.b16 %v1325
    %v1644 = vunpack.c.h.b16 %v1325
    %v1645 = vunpack.c.l.b16 %v1326
    %v1646 = vunpack.c.h.b16 %v1326
    %v1647 = vunpack.c.l.b16 %v1327
    %v1648 = vunpack.c.h.b16 %v1327
    %v1649 = vunpack.c.l.b16 %v1328
    %v1650 = vunpack.c.h.b16 %v1328
    %v1651 = vunpack.c.l.b16 %v1329
    %v1652 = vunpack.c.h.b16 %v1329
    %v1653 = vunpack.c.l.b16 %v1330
    %v1654 = vunpack.c.h.b16 %v1330
    %v1655 = vunpack.c.l.b16 %v1331
    %v1656 = vunpack.c.h.b16 %v1331
    %v1657 = vunpack.c.l.b16 %v1332
    %v1658 = vunpack.c.h.b16 %v1332
    %v1659 = vunpack.c.l.b16 %v1333
    %v1660 = vunpack.c.h.b16 %v1333
    %v1661 = vunpack.c.l.b16 %v1334
    %v1662 = vunpack.c.h.b16 %v1334
    %v1663 = vunpack.c.l.b16 %v1335
    %v1664 = vunpack.c.h.b16 %v1335
    %v1665 = vunpack.c.l.b16 %v1336
    %v1666 = vunpack.c.h.b16 %v1336
    %v1667 = vunpack.c.l.b16 %v1337
    %v1668 = vunpack.c.h.b16 %v1337
    %v1669 = vunpack.c.l.b16 %v1338
    %v1670 = vunpack.c.h.b16 %v1338
    %v1671 = vunpack.c.l.b16 %v1339
    %v1672 = vunpack.c.h.b16 %v1339
    %v1673 = vunpack.c.l.b16 %v1340
    %v1674 = vunpack.c.h.b16 %v1340
    %v1675 = vunpack.c.l.b16 %v1341
    %v1676 = vunpack.c.h.b16 %v1341
    %v1677 = vunpack.c.l.b16 %v1342
    %v1678 = vunpack.c.h.b16 %v1342
    %v1679 = vunpack.c.l.b16 %v1343
    %v1680 = vunpack.c.h.b16 %v1343
    %v1681 = vunpack.c.l.b16 %v1344
    %v1682 = vunpack.c.h.b16 %v1344
    %v1683 = vunpack.c.l.b16 %v1345
    %v1684 = vunpack.c.h.b16 %v1345
    %v1685 = vunpack.c.l.b16 %v1346
    %v1686 = vunpack.c.h.b16 %v1346
    %v1687 = vunpack.c.l.b16 %v1347
    %v1688 = vunpack.c.h.b16 %v1347
    %v1689 = vunpack.c.l.b16 %v1348
    %v1690 = vunpack.c.h.b16 %v1348
    %v1691 = vunpack.c.l.b16 %v1349
    %v1692 = vunpack.c.h.b16 %v1349
    %v1693 = vunpack.c.l.b16 %v1350
    %v1694 = vunpack.c.h.b16 %v1350
    %v1695 = vunpack.c.l.b16 %v1351
    %v1696 = vunpack.c.h.b16 %v1351
    %v1697 = vunpack.c.l.b16 %v1352
    %v1698 = vunpack.c.h.b16 %v1352
    %v1699 = vunpack.c.l.b16 %v1353
    %v1700 = vunpack.c.h.b16 %v1353
    %v1701 = vunpack.c.l.b16 %v1354
    %v1702 = vunpack.c.h.b16 %v1354
    %v1703 = vunpack.c.l.b16 %v1355
    %v1704 = vunpack.c.h.b16 %v1355
    %v1705 = vunpack.c.l.b16 %v1356
    %v1706 = vunpack.c.h.b16 %v1356
    %v1707 = vunpack.c.l.b16 %v1357
    %v1708 = vunpack.c.h.b16 %v1357
    %v1709 = vunpack.c.l.b16 %v1358
    %v1710 = vunpack.c.h.b16 %v1358
    %v1711 = vunpack.c.l.b16 %v1359
    %v1712 = vunpack.c.h.b16 %v1359
    %v1713 = vunpack.c.l.b16 %v1360
    %v1714 = vunpack.c.h.b16 %v1360
    %v1715 = vunpack.c.l.b16 %v1361
    %v1716 = vunpack.c.h.b16 %v1361
    %v1717 = vunpack.c.l.b16 %v1362
    %v1718 = vunpack.c.h.b16 %v1362
    %v1719 = vunpack.c.l.b16 %v1363
    %v1720 = vunpack.c.h.b16 %v1363
    %v1721 = vunpack.c.l.b16 %v1364
    %v1722 = vunpack.c.h.b16 %v1364
    %v1723 = vunpack.c.l.b16 %v1365
    %v1724 = vunpack.c.h.b16 %v1365
    %v1725 = vunpack.c.l.b16 %v1366
    %v1726 = vunpack.c.h.b16 %v1366
    %v1727 = vunpack.c.l.b16 %v1367
    %v1728 = vunpack.c.h.b16 %v1367
    %v1729 = vunpack.c.l.b16 %v1368
    %v1730 = vunpack.c.h.b16 %v1368
    %v1731 = vunpack.c.l.b16 %v1369
    %v1732 = vunpack.c.h.b16 %v1369
    %v1733 = vunpack.c.l.b16 %v1370
    %v1734 = vunpack.c.h.b16 %v1370
    %v1735 = vunpack.c.l.b16 %v1371
    %v1736 = vunpack.c.h.b16 %v1371
    %v1737 = vunpack.c.l.b16 %v1372
    %v1738 = vunpack.c.h.b16 %v1372
    %v1739 = vunpack.c.l.b16 %v1373
    %v1740 = vunpack.c.h.b16 %v1373
    %v1741 = vunpack.c.l.b16 %v1374
    %v1742 = vunpack.c.h.b16 %v1374
    %v1743 = vunpack.c.l.b16 %v1375
    %v1744 = vunpack.c.h.b16 %v1375
    %v1745 = vunpack.c.l.b16 %v1376
    %v1746 = vunpack.c.h.b16 %v1376
    %v1747 = vunpack.c.l.b16 %v1377
    %v1748 = vunpack.c.h.b16 %v1377
    %v1749 = vunpack.c.l.b16 %v1378
    %v1750 = vunpack.c.h.b16 %v1378
    %v1751 = vunpack.c.l.b16 %v1379
    %v1752 = vunpack.c.h.b16 %v1379
    %v1753 = vunpack.c.l.b16 %v1380
    %v1754 = vunpack.c.h.b16 %v1380
    %v1755 = vunpack.c.l.b16 %v1381
    %v1756 = vunpack.c.h.b16 %v1381
    %v1757 = vunpack.c.l.b16 %v1382
    %v1758 = vunpack.c.h.b16 %v1382
    %v1759 = vunpack.c.l.b16 %v1383
    %v1760 = vunpack.c.h.b16 %v1383
    %v1761 = vunpack.c.l.b16 %v1384
    %v1762 = vunpack.c.h.b16 %v1384
    %v1763 = vunpack.c.l.b16 %v1385
    %v1764 = vunpack.c.h.b16 %v1385
    %v1765 = vunpack.c.l.b16 %v1386
    %v1766 = vunpack.c.h.b16 %v1386
    %v1767 = vunpack.c.l.b16 %v1387
    %v1768 = vunpack.c.h.b16 %v1387
    %v1769 = vunpack.c.l.b16 %v1388
    %v1770 = vunpack.c.h.b16 %v1388
    %v1771 = vunpack.c.l.b16 %v1389
    %v1772 = vunpack.c.h.b16 %v1389
    %v1773 = vunpack.c.l.b16 %v1390
    %v1774 = vunpack.c.h.b16 %v1390
    %v1775 = vunpack.c.l.b16 %v1391
    %v1776 = vunpack.c.h.b16 %v1391
    %v1777 = vunpack.c.l.b16 %v1392
    %v1778 = vunpack.c.h.b16 %v1392
    %v1779 = vunpack.c.l.b16 %v1393
    %v1780 = vunpack.c.h.b16 %v1393
    %v1781 = vunpack.c.l.b16 %v1394
    %v1782 = vunpack.c.h.b16 %v1394
    %v1783 = vunpack.c.l.b16 %v1395
    %v1784 = vunpack.c.h.b16 %v1395
    %v1785 = vunpack.c.l.b16 %v1396
    %v1786 = vunpack.c.h.b16 %v1396
    %v1787 = vunpack.c.l.b16 %v1397
    %v1788 = vunpack.c.h.b16 %v1397
    %v1789 = vunpack.c.l.b16 %v1398
    %v1790 = vunpack.c.h.b16 %v1398
    %v1791 = vunpack.c.l.b16 %v1399
    %v1792 = vunpack.c.h.b16 %v1399
    %v1793 = vunpack.c.l.b16 %v1400
    %v1794 = vunpack.c.h.b16 %v1400
    %v1795 = vpack.c.b16 %v1543, %v1539
    %v1796 = vpack.c.b16 %v1544, %v1540
    %v1797 = vpack.c.b16 %v1545, %v1541
    %v1798 = vpack.c.b16 %v1546, %v1542
    %v1799 = vpack.c.b16 %v1551, %v1547
    %v1800 = vpack.c.b16 %v1552, %v1548
    %v1801 = vpack.c.b16 %v1553, %v1549
    %v1802 = vpack.c.b16 %v1554, %v1550
    %v1803 = vpack.c.b16 %v1559, %v1555
    %v1804 = vpack.c.b16 %v1560, %v1556
    %v1805 = vpack.c.b16 %v1561, %v1557
    %v1806 = vpack.c.b16 %v1562, %v1558
    %v1807 = vpack.c.b16 %v1567, %v1563
    %v1808 = vpack.c.b16 %v1568, %v1564
    %v1809 = vpack.c.b16 %v1569, %v1565
    %v1810 = vpack.c.b16 %v1570, %v1566
    %v1811 = vpack.c.b16 %v1575, %v1571
    %v1812 = vpack.c.b16 %v1576, %v1572
    %v1813 = vpack.c.b16 %v1577, %v1573
    %v1814 = vpack.c.b16 %v1578, %v1574
    %v1815 = vpack.c.b16 %v1583, %v1579
    %v1816 = vpack.c.b16 %v1584, %v1580
    %v1817 = vpack.c.b16 %v1585, %v1581
    %v1818 = vpack.c.b16 %v1586, %v1582
    %v1819 = vpack.c.b16 %v1591, %v1587
    %v1820 = vpack.c.b16 %v1592, %v1588
    %v1821 = vpack.c.b16 %v1593, %v1589
    %v1822 = vpack.c.b16 %v1594, %v1590
    %v1823 = vpack.c.b16 %v1599, %v1595
    %v1824 = vpack.c.b16 %v1600, %v1596
    %v1825 = vpack.c.b16 %v1601, %v1597
    %v1826 = vpack.c.b16 %v1602, %v1598
    %v1827 = vpack.c.b16 %v1607, %v1603
    %v1828 = vpack.c.b16 %v1608, %v1604
    %v1829 = vpack.c.b16 %v1609, %v1605
    %v1830 = vpack.c.b16 %v1610, %v1606
    %v1831 = vpack.c.b16 %v1615, %v1611
    %v1832 = vpack.c.b16 %v1616, %v1612
    %v1833 = vpack.c.b16 %v1617, %v1613
    %v1834 = vpack.c.b16 %v1618, %v1614
    %v1835 = vpack.c.b16 %v1623, %v1619
    %v1836 = vpack.c.b16 %v1624, %v1620
    %v1837 = vpack.c.b16 %v1625, %v1621
    %v1838 = vpack.c.b16 %v1626, %v1622
    %v1839 = vpack.c.b16 %v1631, %v1627
    %v1840 = vpack.c.b16 %v1632, %v1628
    %v1841 = vpack.c.b16 %v1633, %v1629
    %v1842 = vpack.c.b16 %v1634, %v1630
    %v1843 = vpack.c.b16 %v1639, %v1635
    %v1844 = vpack.c.b16 %v1640, %v1636
    %v1845 = vpack.c.b16 %v1641, %v1637
    %v1846 = vpack.c.b16 %v1642, %v1638
    %v1847 = vpack.c.b16 %v1647, %v1643
    %v1848 = vpack.c.b16 %v1648, %v1644
    %v1849 = vpack.c.b16 %v1649, %v1645
    %v1850 = vpack.c.b16 %v1650, %v1646
    %v1851 = vpack.c.b16 %v1655, %v1651
    %v1852 = vpack.c.b16 %v1656, %v1652
    %v1853 = vpack.c.b16 %v1657, %v1653
    %v1854 = vpack.c.b16 %v1658, %v1654
    %v1855 = vpack.c.b16 %v1663, %v1659
    %v1856 = vpack.c.b16 %v1664, %v1660
    %v1857 = vpack.c.b16 %v1665, %v1661
    %v1858 = vpack.c.b16 %v1666, %v1662
    %v1859 = vpack.c.b16 %v1671, %v1667
    %v1860 = vpack.c.b16 %v1672, %v1668
    %v1861 = vpack.c.b16 %v1673, %v1669
    %v1862 = vpack.c.b16 %v1674, %v1670
    %v1863 = vpack.c.b16 %v1679, %v1675
    %v1864 = vpack.c.b16 %v1680, %v1676
    %v1865 = vpack.c.b16 %v1681, %v1677
    %v1866 = vpack.c.b16 %v1682, %v1678
    %v1867 = vpack.c.b16 %v1687, %v1683
    %v1868 = vpack.c.b16 %v1688, %v1684
    %v1869 = vpack.c.b16 %v1689, %v1685
    %v1870 = vpack.c.b16 %v1690, %v1686
    %v1871 = vpack.c.b16 %v1695, %v1691
    %v1872 = vpack.c.b16 %v1696, %v1692
    %v1873 = vpack.c.b16 %v1697, %v1693
    %v1874 = vpack.c.b16 %v1698, %v1694
    %v1875 = vpack.c.b16 %v1703, %v1699
    %v1876 = vpack.c.b16 %v1704, %v1700
    %v1877 = vpack.c.b16 %v1705, %v1701
    %v1878 = vpack.c.b16 %v1706, %v1702
    %v1879 = vpack.c.b16 %v1711, %v1707
    %v1880 = vpack.c.b16 %v1712, %v1708
    %v1881 = vpack.c.b16 %v1713, %v1709
    %v1882 = vpack.c.b16 %v1714, %v1710
    %v1883 = vpack.c.b16 %v1719, %v1715
    %v1884 = vpack.c.b16 %v1720, %v1716
    %v1885 = vpack.c.b16 %v1721, %v1717
    %v1886 = vpack.c.b16 %v1722, %v1718
    %v1887 = vpack.c.b16 %v1727, %v1723
    %v1888 = vpack.c.b16 %v1728, %v1724
    %v1889 = vpack.c.b16 %v1729, %v1725
    %v1890 = vpack.c.b16 %v1730, %v1726
    %v1891 = vpack.c.b16 %v1735, %v1731
    %v1892 = vpack.c.b16 %v1736, %v1732
    %v1893 = vpack.c.b16 %v1737, %v1733
    %v1894 = vpack.c.b16 %v1738, %v1734
    %v1895 = vpack.c.b16 %v1743, %v1739
    %v1896 = vpack.c.b16 %v1744, %v1740
    %v1897 = vpack.c.b16 %v1745, %v1741
    %v1898 = vpack.c.b16 %v1746, %v1742
    %v1899 = vpack.c.b16 %v1751, %v1747
    %v1900 = vpack.c.b16 %v1752, %v1748
    %v1901 = vpack.c.b16 %v1753, %v1749
    %v1902 = vpack.c.b16 %v1754, %v1750
    %v1903 = vpack.c.b16 %v1759, %v1755
    %v1904 = vpack.c.b16 %v1760, %v1756
    %v1905 = vpack.c.b16 %v1761, %v1757
    %v1906 = vpack.c.b16 %v1762, %v1758
    %v1907 = vpack.c.b16 %v1767, %v1763
    %v1908 = vpack.c.b16 %v1768, %v1764
    %v1909 = vpack.c.b16 %v1769, %v1765
    %v1910 = vpack.c.b16 %v1770, %v1766
    %v1911 = vpack.c.b16 %v1775, %v1771
    %v1912 = vpack.c.b16 %v1776, %v1772
    %v1913 = vpack.c.b16 %v1777, %v1773
    %v1914 = vpack.c.b16 %v1778, %v1774
    %v1915 = vpack.c.b16 %v1783, %v1779
    %v1916 = vpack.c.b16 %v1784, %v1780
    %v1917 = vpack.c.b16 %v1785, %v1781
    %v1918 = vpack.c.b16 %v1786, %v1782
    %v1919 = vpack.c.b16 %v1791, %v1787
    %v1920 = vpack.c.b16 %v1792, %v1788
    %v1921 = vpack.c.b16 %v1793, %v1789
    %v1922 = vpack.c.b16 %v1794, %v1790
    %2051 = vmatpush.bf16.msra.mxu0 %v1823
    %2052 = vmatpush.bf16.msra.mxu0 %v1819
    %2053 = vmatpush.bf16.msra.mxu0 %v1815
    %2054 = vmatpush.bf16.msra.mxu0 %v1811
    %2055 = vmatpush.bf16.msra.mxu0 %v1807
    %2056 = vmatpush.bf16.msra.mxu0 %v1803
    %2057 = vmatpush.bf16.msra.mxu0 %v1799
    %2058 = vmatpush.bf16.msra.mxu0 %v1795
    %2059 = vmatmul.bf16.gmra.mxu0 %v1269
    %v2060 = vpop.f32.mrf.mxu0
    %v2061 = vadd.f32 %v1403, %v2060
    %v2062 = vpop.f32.mrf.mxu0
    %2063 = vdwg.mxu0
    %2064 = vmatpush.bf16.msra.mxu0 %v1855
    %2065 = vmatpush.bf16.msra.mxu0 %v1851
    %2066 = vmatpush.bf16.msra.mxu0 %v1847
    %2067 = vmatpush.bf16.msra.mxu0 %v1843
    %2068 = vmatpush.bf16.msra.mxu0 %v1839
    %2069 = vmatpush.bf16.msra.mxu0 %v1835
    %2070 = vmatpush.bf16.msra.mxu0 %v1831
    %2071 = vmatpush.bf16.msra.mxu0 %v1827
    %2072 = vmatmul.bf16.gmra.mxu0 %v1270
    %v2073 = vpop.f32.mrf.mxu0
    %v2074 = vadd.f32 %v2061, %v2073
    %v2075 = vpop.f32.mrf.mxu0
    %2076 = vdwg.mxu0
    %2077 = vmatpush.bf16.msra.mxu0 %v1887
    %2078 = vmatpush.bf16.msra.mxu0 %v1883
    %2079 = vmatpush.bf16.msra.mxu0 %v1879
    %2080 = vmatpush.bf16.msra.mxu0 %v1875
    %2081 = vmatpush.bf16.msra.mxu0 %v1871
    %2082 = vmatpush.bf16.msra.mxu0 %v1867
    %2083 = vmatpush.bf16.msra.mxu0 %v1863
    %2084 = vmatpush.bf16.msra.mxu0 %v1859
    %2085 = vmatmul.bf16.gmra.mxu0 %v1271
    %v2086 = vpop.f32.mrf.mxu0
    %v2087 = vadd.f32 %v2074, %v2086
    %v2088 = vpop.f32.mrf.mxu0
    %2089 = vdwg.mxu0
    %2090 = vmatpush.bf16.msra.mxu0 %v1919
    %2091 = vmatpush.bf16.msra.mxu0 %v1915
    %2092 = vmatpush.bf16.msra.mxu0 %v1911
    %2093 = vmatpush.bf16.msra.mxu0 %v1907
    %2094 = vmatpush.bf16.msra.mxu0 %v1903
    %2095 = vmatpush.bf16.msra.mxu0 %v1899
    %2096 = vmatpush.bf16.msra.mxu0 %v1895
    %2097 = vmatpush.bf16.msra.mxu0 %v1891
    %2098 = vmatmul.bf16.gmra.mxu0 %v1272
    %v2099 = vpop.f32.mrf.mxu0
    %v2100 = vadd.f32 %v2087, %v2099
    %v2101 = vpop.f32.mrf.mxu0
    %2102 = vdwg.mxu0
    %2103 = vmatpush.bf16.msra.mxu0 %v1824
    %2104 = vmatpush.bf16.msra.mxu0 %v1820
    %2105 = vmatpush.bf16.msra.mxu0 %v1816
    %2106 = vmatpush.bf16.msra.mxu0 %v1812
    %2107 = vmatpush.bf16.msra.mxu0 %v1808
    %2108 = vmatpush.bf16.msra.mxu0 %v1804
    %2109 = vmatpush.bf16.msra.mxu0 %v1800
    %2110 = vmatpush.bf16.msra.mxu0 %v1796
    %2111 = vmatmul.bf16.gmra.mxu0 %v1269
    %v2112 = vpop.f32.mrf.mxu0
    %v2113 = vadd.f32 %v1404, %v2112
    %v2114 = vpop.f32.mrf.mxu0
    %2115 = vdwg.mxu0
    %2116 = vmatpush.bf16.msra.mxu0 %v1856
    %2117 = vmatpush.bf16.msra.mxu0 %v1852
    %2118 = vmatpush.bf16.msra.mxu0 %v1848
    %2119 = vmatpush.bf16.msra.mxu0 %v1844
    %2120 = vmatpush.bf16.msra.mxu0 %v1840
    %2121 = vmatpush.bf16.msra.mxu0 %v1836
    %2122 = vmatpush.bf16.msra.mxu0 %v1832
    %2123 = vmatpush.bf16.msra.mxu0 %v1828
    %2124 = vmatmul.bf16.gmra.mxu0 %v1270
    %v2125 = vpop.f32.mrf.mxu0
    %v2126 = vadd.f32 %v2113, %v2125
    %v2127 = vpop.f32.mrf.mxu0
    %2128 = vdwg.mxu0
    %2129 = vmatpush.bf16.msra.mxu0 %v1888
    %2130 = vmatpush.bf16.msra.mxu0 %v1884
    %2131 = vmatpush.bf16.msra.mxu0 %v1880
    %2132 = vmatpush.bf16.msra.mxu0 %v1876
    %2133 = vmatpush.bf16.msra.mxu0 %v1872
    %2134 = vmatpush.bf16.msra.mxu0 %v1868
    %2135 = vmatpush.bf16.msra.mxu0 %v1864
    %2136 = vmatpush.bf16.msra.mxu0 %v1860
    %2137 = vmatmul.bf16.gmra.mxu0 %v1271
    %v2138 = vpop.f32.mrf.mxu0
    %v2139 = vadd.f32 %v2126, %v2138
    %v2140 = vpop.f32.mrf.mxu0
    %2141 = vdwg.mxu0
    %2142 = vmatpush.bf16.msra.mxu0 %v1920
    %2143 = vmatpush.bf16.msra.mxu0 %v1916
    %2144 = vmatpush.bf16.msra.mxu0 %v1912
    %2145 = vmatpush.bf16.msra.mxu0 %v1908
    %2146 = vmatpush.bf16.msra.mxu0 %v1904
    %2147 = vmatpush.bf16.msra.mxu0 %v1900
    %2148 = vmatpush.bf16.msra.mxu0 %v1896
    %2149 = vmatpush.bf16.msra.mxu0 %v1892
    %2150 = vmatmul.bf16.gmra.mxu0 %v1272
    %v2151 = vpop.f32.mrf.mxu0
    %v2152 = vadd.f32 %v2139, %v2151
    %v2153 = vpop.f32.mrf.mxu0
    %2154 = vdwg.mxu0
    %2155 = vmatpush.bf16.msra.mxu0 %v1825
    %2156 = vmatpush.bf16.msra.mxu0 %v1821
    %2157 = vmatpush.bf16.msra.mxu0 %v1817
    %2158 = vmatpush.bf16.msra.mxu0 %v1813
    %2159 = vmatpush.bf16.msra.mxu0 %v1809
    %2160 = vmatpush.bf16.msra.mxu0 %v1805
    %2161 = vmatpush.bf16.msra.mxu0 %v1801
    %2162 = vmatpush.bf16.msra.mxu0 %v1797
    %2163 = vmatmul.bf16.gmra.mxu0 %v1269
    %v2164 = vpop.f32.mrf.mxu0
    %v2165 = vadd.f32 %v1405, %v2164
    %v2166 = vpop.f32.mrf.mxu0
    %2167 = vdwg.mxu0
    %2168 = vmatpush.bf16.msra.mxu0 %v1857
    %2169 = vmatpush.bf16.msra.mxu0 %v1853
    %2170 = vmatpush.bf16.msra.mxu0 %v1849
    %2171 = vmatpush.bf16.msra.mxu0 %v1845
    %2172 = vmatpush.bf16.msra.mxu0 %v1841
    %2173 = vmatpush.bf16.msra.mxu0 %v1837
    %2174 = vmatpush.bf16.msra.mxu0 %v1833
    %2175 = vmatpush.bf16.msra.mxu0 %v1829
    %2176 = vmatmul.bf16.gmra.mxu0 %v1270
    %v2177 = vpop.f32.mrf.mxu0
    %v2178 = vadd.f32 %v2165, %v2177
    %v2179 = vpop.f32.mrf.mxu0
    %2180 = vdwg.mxu0
    %2181 = vmatpush.bf16.msra.mxu0 %v1889
    %2182 = vmatpush.bf16.msra.mxu0 %v1885
    %2183 = vmatpush.bf16.msra.mxu0 %v1881
    %2184 = vmatpush.bf16.msra.mxu0 %v1877
    %2185 = vmatpush.bf16.msra.mxu0 %v1873
    %2186 = vmatpush.bf16.msra.mxu0 %v1869
    %2187 = vmatpush.bf16.msra.mxu0 %v1865
    %2188 = vmatpush.bf16.msra.mxu0 %v1861
    %2189 = vmatmul.bf16.gmra.mxu0 %v1271
    %v2190 = vpop.f32.mrf.mxu0
    %v2191 = vadd.f32 %v2178, %v2190
    %v2192 = vpop.f32.mrf.mxu0
    %2193 = vdwg.mxu0
    %2194 = vmatpush.bf16.msra.mxu0 %v1921
    %2195 = vmatpush.bf16.msra.mxu0 %v1917
    %2196 = vmatpush.bf16.msra.mxu0 %v1913
    %2197 = vmatpush.bf16.msra.mxu0 %v1909
    %2198 = vmatpush.bf16.msra.mxu0 %v1905
    %2199 = vmatpush.bf16.msra.mxu0 %v1901
    %2200 = vmatpush.bf16.msra.mxu0 %v1897
    %2201 = vmatpush.bf16.msra.mxu0 %v1893
    %2202 = vmatmul.bf16.gmra.mxu0 %v1272
    %v2203 = vpop.f32.mrf.mxu0
    %v2204 = vadd.f32 %v2191, %v2203
    %v2205 = vpop.f32.mrf.mxu0
    %2206 = vdwg.mxu0
    %2207 = vmatpush.bf16.msra.mxu0 %v1826
    %2208 = vmatpush.bf16.msra.mxu0 %v1822
    %2209 = vmatpush.bf16.msra.mxu0 %v1818
    %2210 = vmatpush.bf16.msra.mxu0 %v1814
    %2211 = vmatpush.bf16.msra.mxu0 %v1810
    %2212 = vmatpush.bf16.msra.mxu0 %v1806
    %2213 = vmatpush.bf16.msra.mxu0 %v1802
    %2214 = vmatpush.bf16.msra.mxu0 %v1798
    %2215 = vmatmul.bf16.gmra.mxu0 %v1269
    %v2216 = vpop.f32.mrf.mxu0
    %v2217 = vadd.f32 %v1406, %v2216
    %v2218 = vpop.f32.mrf.mxu0
    %2219 = vdwg.mxu0
    %2220 = vmatpush.bf16.msra.mxu0 %v1858
    %2221 = vmatpush.bf16.msra.mxu0 %v1854
    %2222 = vmatpush.bf16.msra.mxu0 %v1850
    %2223 = vmatpush.bf16.msra.mxu0 %v1846
    %2224 = vmatpush.bf16.msra.mxu0 %v1842
    %2225 = vmatpush.bf16.msra.mxu0 %v1838
    %2226 = vmatpush.bf16.msra.mxu0 %v1834
    %2227 = vmatpush.bf16.msra.mxu0 %v1830
    %2228 = vmatmul.bf16.gmra.mxu0 %v1270
    %v2229 = vpop.f32.mrf.mxu0
    %v2230 = vadd.f32 %v2217, %v2229
    %v2231 = vpop.f32.mrf.mxu0
    %2232 = vdwg.mxu0
    %2233 = vmatpush.bf16.msra.mxu0 %v1890
    %2234 = vmatpush.bf16.msra.mxu0 %v1886
    %2235 = vmatpush.bf16.msra.mxu0 %v1882
    %2236 = vmatpush.bf16.msra.mxu0 %v1878
    %2237 = vmatpush.bf16.msra.mxu0 %v1874
    %2238 = vmatpush.bf16.msra.mxu0 %v1870
    %2239 = vmatpush.bf16.msra.mxu0 %v1866
    %2240 = vmatpush.bf16.msra.mxu0 %v1862
    %2241 = vmatmul.bf16.gmra.mxu0 %v1271
    %v2242 = vpop.f32.mrf.mxu0
    %v2243 = vadd.f32 %v2230, %v2242
    %v2244 = vpop.f32.mrf.mxu0
    %2245 = vdwg.mxu0
    %2246 = vmatpush.bf16.msra.mxu0 %v1922
    %2247 = vmatpush.bf16.msra.mxu0 %v1918
    %2248 = vmatpush.bf16.msra.mxu0 %v1914
    %2249 = vmatpush.bf16.msra.mxu0 %v1910
    %2250 = vmatpush.bf16.msra.mxu0 %v1906
    %2251 = vmatpush.bf16.msra.mxu0 %v1902
    %2252 = vmatpush.bf16.msra.mxu0 %v1898
    %2253 = vmatpush.bf16.msra.mxu0 %v1894
    %2254 = vmatmul.bf16.gmra.mxu0 %v1272
    %v2255 = vpop.f32.mrf.mxu0
    %v2256 = vadd.f32 %v2243, %v2255
    %v2257 = vpop.f32.mrf.mxu0
    %2258 = vdwg.mxu0
    %v2259 = vmax.f32 %v2100, 0.0
    %v2260 = vmax.f32 %v2152, 0.0
    %v2261 = vmax.f32 %v2204, 0.0
    %v2262 = vmax.f32 %v2256, 0.0
    %v2263 = vpack.c.bf16 %v2259, %v2259
    %v2264 = vpack.c.bf16 %v2260, %v2260
    %v2265 = vpack.c.bf16 %v2261, %v2261
    %v2266 = vpack.c.bf16 %v2262, %v2262
    %v2267 = vld [vmem:[#allocation16] sm:$0xff]
    %v2268 = vld [vmem:[#allocation16 + $0x8] sm:$0xff]
    %v2269 = vld [vmem:[#allocation16 + $0x10] sm:$0xff]
    %v2270 = vld [vmem:[#allocation16 + $0x18] sm:$0xff]
    %v2271 = vld [vmem:[#allocation16 + $0x20] sm:$0xff]
    %v2272 = vld [vmem:[#allocation16 + $0x28] sm:$0xff]
    %v2273 = vld [vmem:[#allocation16 + $0x30] sm:$0xff]
    %v2274 = vld [vmem:[#allocation16 + $0x38] sm:$0xff]
    %v2275 = vld [vmem:[#allocation16 + $0x40] sm:$0xff]
    %v2276 = vld [vmem:[#allocation16 + $0x48] sm:$0xff]
    %v2277 = vld [vmem:[#allocation16 + $0x50] sm:$0xff]
    %v2278 = vld [vmem:[#allocation16 + $0x58] sm:$0xff]
    %v2279 = vld [vmem:[#allocation16 + $0x60] sm:$0xff]
    %v2280 = vld [vmem:[#allocation16 + $0x68] sm:$0xff]
    %v2281 = vld [vmem:[#allocation16 + $0x70] sm:$0xff]
    %v2282 = vld [vmem:[#allocation16 + $0x78] sm:$0xff]
    %v2283 = vld [vmem:[#allocation16 + $0x80] sm:$0xff]
    %v2284 = vld [vmem:[#allocation16 + $0x88] sm:$0xff]
    %v2285 = vld [vmem:[#allocation16 + $0x90] sm:$0xff]
    %v2286 = vld [vmem:[#allocation16 + $0x98] sm:$0xff]
    %v2287 = vld [vmem:[#allocation16 + $0xa0] sm:$0xff]
    %v2288 = vld [vmem:[#allocation16 + $0xa8] sm:$0xff]
    %v2289 = vld [vmem:[#allocation16 + $0xb0] sm:$0xff]
    %v2290 = vld [vmem:[#allocation16 + $0xb8] sm:$0xff]
    %v2291 = vld [vmem:[#allocation16 + $0xc0] sm:$0xff]
    %v2292 = vld [vmem:[#allocation16 + $0xc8] sm:$0xff]
    %v2293 = vld [vmem:[#allocation16 + $0xd0] sm:$0xff]
    %v2294 = vld [vmem:[#allocation16 + $0xd8] sm:$0xff]
    %v2295 = vld [vmem:[#allocation16 + $0xe0] sm:$0xff]
    %v2296 = vld [vmem:[#allocation16 + $0xe8] sm:$0xff]
    %v2297 = vld [vmem:[#allocation16 + $0xf0] sm:$0xff]
    %v2298 = vld [vmem:[#allocation16 + $0xf8] sm:$0xff]
    %v2299 = vld [vmem:[#allocation16 + $0x100] sm:$0xff]
    %v2300 = vld [vmem:[#allocation16 + $0x108] sm:$0xff]
    %v2301 = vld [vmem:[#allocation16 + $0x110] sm:$0xff]
    %v2302 = vld [vmem:[#allocation16 + $0x118] sm:$0xff]
    %v2303 = vld [vmem:[#allocation16 + $0x120] sm:$0xff]
    %v2304 = vld [vmem:[#allocation16 + $0x128] sm:$0xff]
    %v2305 = vld [vmem:[#allocation16 + $0x130] sm:$0xff]
    %v2306 = vld [vmem:[#allocation16 + $0x138] sm:$0xff]
    %v2307 = vld [vmem:[#allocation16 + $0x140] sm:$0xff]
    %v2308 = vld [vmem:[#allocation16 + $0x148] sm:$0xff]
    %v2309 = vld [vmem:[#allocation16 + $0x150] sm:$0xff]
    %v2310 = vld [vmem:[#allocation16 + $0x158] sm:$0xff]
    %v2311 = vld [vmem:[#allocation16 + $0x160] sm:$0xff]
    %v2312 = vld [vmem:[#allocation16 + $0x168] sm:$0xff]
    %v2313 = vld [vmem:[#allocation16 + $0x170] sm:$0xff]
    %v2314 = vld [vmem:[#allocation16 + $0x178] sm:$0xff]
    %v2315 = vld [vmem:[#allocation16 + $0x180] sm:$0xff]
    %v2316 = vld [vmem:[#allocation16 + $0x188] sm:$0xff]
    %v2317 = vld [vmem:[#allocation16 + $0x190] sm:$0xff]
    %v2318 = vld [vmem:[#allocation16 + $0x198] sm:$0xff]
    %v2319 = vld [vmem:[#allocation16 + $0x1a0] sm:$0xff]
    %v2320 = vld [vmem:[#allocation16 + $0x1a8] sm:$0xff]
    %v2321 = vld [vmem:[#allocation16 + $0x1b0] sm:$0xff]
    %v2322 = vld [vmem:[#allocation16 + $0x1b8] sm:$0xff]
    %v2323 = vld [vmem:[#allocation16 + $0x1c0] sm:$0xff]
    %v2324 = vld [vmem:[#allocation16 + $0x1c8] sm:$0xff]
    %v2325 = vld [vmem:[#allocation16 + $0x1d0] sm:$0xff]
    %v2326 = vld [vmem:[#allocation16 + $0x1d8] sm:$0xff]
    %v2327 = vld [vmem:[#allocation16 + $0x1e0] sm:$0xff]
    %v2328 = vld [vmem:[#allocation16 + $0x1e8] sm:$0xff]
    %v2329 = vld [vmem:[#allocation16 + $0x1f0] sm:$0xff]
    %v2330 = vld [vmem:[#allocation16 + $0x1f8] sm:$0xff]
    %v2331 = vld [vmem:[%s11] sm:$0x3]
    %v2333 = vperm.slane %v2331, 0
    %v2334 = vperm.slane %v2331, 1
    %v2401 = vunpack.c.l.b16 %v2267
    %v2402 = vunpack.c.h.b16 %v2267
    %v2403 = vunpack.c.l.b16 %v2268
    %v2404 = vunpack.c.h.b16 %v2268
    %v2405 = vunpack.c.l.b16 %v2269
    %v2406 = vunpack.c.h.b16 %v2269
    %v2407 = vunpack.c.l.b16 %v2270
    %v2408 = vunpack.c.h.b16 %v2270
    %v2409 = vunpack.c.l.b16 %v2271
    %v2410 = vunpack.c.h.b16 %v2271
    %v2411 = vunpack.c.l.b16 %v2272
    %v2412 = vunpack.c.h.b16 %v2272
    %v2413 = vunpack.c.l.b16 %v2273
    %v2414 = vunpack.c.h.b16 %v2273
    %v2415 = vunpack.c.l.b16 %v2274
    %v2416 = vunpack.c.h.b16 %v2274
    %v2417 = vunpack.c.l.b16 %v2275
    %v2418 = vunpack.c.h.b16 %v2275
    %v2419 = vunpack.c.l.b16 %v2276
    %v2420 = vunpack.c.h.b16 %v2276
    %v2421 = vunpack.c.l.b16 %v2277
    %v2422 = vunpack.c.h.b16 %v2277
    %v2423 = vunpack.c.l.b16 %v2278
    %v2424 = vunpack.c.h.b16 %v2278
    %v2425 = vunpack.c.l.b16 %v2279
    %v2426 = vunpack.c.h.b16 %v2279
    %v2427 = vunpack.c.l.b16 %v2280
    %v2428 = vunpack.c.h.b16 %v2280
    %v2429 = vunpack.c.l.b16 %v2281
    %v2430 = vunpack.c.h.b16 %v2281
    %v2431 = vunpack.c.l.b16 %v2282
    %v2432 = vunpack.c.h.b16 %v2282
    %v2433 = vunpack.c.l.b16 %v2283
    %v2434 = vunpack.c.h.b16 %v2283
    %v2435 = vunpack.c.l.b16 %v2284
    %v2436 = vunpack.c.h.b16 %v2284
    %v2437 = vunpack.c.l.b16 %v2285
    %v2438 = vunpack.c.h.b16 %v2285
    %v2439 = vunpack.c.l.b16 %v2286
    %v2440 = vunpack.c.h.b16 %v2286
    %v2441 = vunpack.c.l.b16 %v2287
    %v2442 = vunpack.c.h.b16 %v2287
    %v2443 = vunpack.c.l.b16 %v2288
    %v2444 = vunpack.c.h.b16 %v2288
    %v2445 = vunpack.c.l.b16 %v2289
    %v2446 = vunpack.c.h.b16 %v2289
    %v2447 = vunpack.c.l.b16 %v2290
    %v2448 = vunpack.c.h.b16 %v2290
    %v2449 = vunpack.c.l.b16 %v2291
    %v2450 = vunpack.c.h.b16 %v2291
    %v2451 = vunpack.c.l.b16 %v2292
    %v2452 = vunpack.c.h.b16 %v2292
    %v2453 = vunpack.c.l.b16 %v2293
    %v2454 = vunpack.c.h.b16 %v2293
    %v2455 = vunpack.c.l.b16 %v2294
    %v2456 = vunpack.c.h.b16 %v2294
    %v2457 = vunpack.c.l.b16 %v2295
    %v2458 = vunpack.c.h.b16 %v2295
    %v2459 = vunpack.c.l.b16 %v2296
    %v2460 = vunpack.c.h.b16 %v2296
    %v2461 = vunpack.c.l.b16 %v2297
    %v2462 = vunpack.c.h.b16 %v2297
    %v2463 = vunpack.c.l.b16 %v2298
    %v2464 = vunpack.c.h.b16 %v2298
    %v2465 = vunpack.c.l.b16 %v2299
    %v2466 = vunpack.c.h.b16 %v2299
    %v2467 = vunpack.c.l.b16 %v2300
    %v2468 = vunpack.c.h.b16 %v2300
    %v2469 = vunpack.c.l.b16 %v2301
    %v2470 = vunpack.c.h.b16 %v2301
    %v2471 = vunpack.c.l.b16 %v2302
    %v2472 = vunpack.c.h.b16 %v2302
    %v2473 = vunpack.c.l.b16 %v2303
    %v2474 = vunpack.c.h.b16 %v2303
    %v2475 = vunpack.c.l.b16 %v2304
    %v2476 = vunpack.c.h.b16 %v2304
    %v2477 = vunpack.c.l.b16 %v2305
    %v2478 = vunpack.c.h.b16 %v2305
    %v2479 = vunpack.c.l.b16 %v2306
    %v2480 = vunpack.c.h.b16 %v2306
    %v2481 = vunpack.c.l.b16 %v2307
    %v2482 = vunpack.c.h.b16 %v2307
    %v2483 = vunpack.c.l.b16 %v2308
    %v2484 = vunpack.c.h.b16 %v2308
    %v2485 = vunpack.c.l.b16 %v2309
    %v2486 = vunpack.c.h.b16 %v2309
    %v2487 = vunpack.c.l.b16 %v2310
    %v2488 = vunpack.c.h.b16 %v2310
    %v2489 = vunpack.c.l.b16 %v2311
    %v2490 = vunpack.c.h.b16 %v2311
    %v2491 = vunpack.c.l.b16 %v2312
    %v2492 = vunpack.c.h.b16 %v2312
    %v2493 = vunpack.c.l.b16 %v2313
    %v2494 = vunpack.c.h.b16 %v2313
    %v2495 = vunpack.c.l.b16 %v2314
    %v2496 = vunpack.c.h.b16 %v2314
    %v2497 = vunpack.c.l.b16 %v2315
    %v2498 = vunpack.c.h.b16 %v2315
    %v2499 = vunpack.c.l.b16 %v2316
    %v2500 = vunpack.c.h.b16 %v2316
    %v2501 = vunpack.c.l.b16 %v2317
    %v2502 = vunpack.c.h.b16 %v2317
    %v2503 = vunpack.c.l.b16 %v2318
    %v2504 = vunpack.c.h.b16 %v2318
    %v2505 = vunpack.c.l.b16 %v2319
    %v2506 = vunpack.c.h.b16 %v2319
    %v2507 = vunpack.c.l.b16 %v2320
    %v2508 = vunpack.c.h.b16 %v2320
    %v2509 = vunpack.c.l.b16 %v2321
    %v2510 = vunpack.c.h.b16 %v2321
    %v2511 = vunpack.c.l.b16 %v2322
    %v2512 = vunpack.c.h.b16 %v2322
    %v2513 = vunpack.c.l.b16 %v2323
    %v2514 = vunpack.c.h.b16 %v2323
    %v2515 = vunpack.c.l.b16 %v2324
    %v2516 = vunpack.c.h.b16 %v2324
    %v2517 = vunpack.c.l.b16 %v2325
    %v2518 = vunpack.c.h.b16 %v2325
    %v2519 = vunpack.c.l.b16 %v2326
    %v2520 = vunpack.c.h.b16 %v2326
    %v2521 = vunpack.c.l.b16 %v2327
    %v2522 = vunpack.c.h.b16 %v2327
    %v2523 = vunpack.c.l.b16 %v2328
    %v2524 = vunpack.c.h.b16 %v2328
    %v2525 = vunpack.c.l.b16 %v2329
    %v2526 = vunpack.c.h.b16 %v2329
    %v2527 = vunpack.c.l.b16 %v2330
    %v2528 = vunpack.c.h.b16 %v2330
    %v2529 = vpack.c.b16 %v2403, %v2401
    %v2530 = vpack.c.b16 %v2404, %v2402
    %v2531 = vpack.c.b16 %v2407, %v2405
    %v2532 = vpack.c.b16 %v2408, %v2406
    %v2533 = vpack.c.b16 %v2411, %v2409
    %v2534 = vpack.c.b16 %v2412, %v2410
    %v2535 = vpack.c.b16 %v2415, %v2413
    %v2536 = vpack.c.b16 %v2416, %v2414
    %v2537 = vpack.c.b16 %v2419, %v2417
    %v2538 = vpack.c.b16 %v2420, %v2418
    %v2539 = vpack.c.b16 %v2423, %v2421
    %v2540 = vpack.c.b16 %v2424, %v2422
    %v2541 = vpack.c.b16 %v2427, %v2425
    %v2542 = vpack.c.b16 %v2428, %v2426
    %v2543 = vpack.c.b16 %v2431, %v2429
    %v2544 = vpack.c.b16 %v2432, %v2430
    %v2545 = vpack.c.b16 %v2435, %v2433
    %v2546 = vpack.c.b16 %v2436, %v2434
    %v2547 = vpack.c.b16 %v2439, %v2437
    %v2548 = vpack.c.b16 %v2440, %v2438
    %v2549 = vpack.c.b16 %v2443, %v2441
    %v2550 = vpack.c.b16 %v2444, %v2442
    %v2551 = vpack.c.b16 %v2447, %v2445
    %v2552 = vpack.c.b16 %v2448, %v2446
    %v2553 = vpack.c.b16 %v2451, %v2449
    %v2554 = vpack.c.b16 %v2452, %v2450
    %v2555 = vpack.c.b16 %v2455, %v2453
    %v2556 = vpack.c.b16 %v2456, %v2454
    %v2557 = vpack.c.b16 %v2459, %v2457
    %v2558 = vpack.c.b16 %v2460, %v2458
    %v2559 = vpack.c.b16 %v2463, %v2461
    %v2560 = vpack.c.b16 %v2464, %v2462
    %v2561 = vpack.c.b16 %v2467, %v2465
    %v2562 = vpack.c.b16 %v2468, %v2466
    %v2563 = vpack.c.b16 %v2471, %v2469
    %v2564 = vpack.c.b16 %v2472, %v2470
    %v2565 = vpack.c.b16 %v2475, %v2473
    %v2566 = vpack.c.b16 %v2476, %v2474
    %v2567 = vpack.c.b16 %v2479, %v2477
    %v2568 = vpack.c.b16 %v2480, %v2478
    %v2569 = vpack.c.b16 %v2483, %v2481
    %v2570 = vpack.c.b16 %v2484, %v2482
    %v2571 = vpack.c.b16 %v2487, %v2485
    %v2572 = vpack.c.b16 %v2488, %v2486
    %v2573 = vpack.c.b16 %v2491, %v2489
    %v2574 = vpack.c.b16 %v2492, %v2490
    %v2575 = vpack.c.b16 %v2495, %v2493
    %v2576 = vpack.c.b16 %v2496, %v2494
    %v2577 = vpack.c.b16 %v2499, %v2497
    %v2578 = vpack.c.b16 %v2500, %v2498
    %v2579 = vpack.c.b16 %v2503, %v2501
    %v2580 = vpack.c.b16 %v2504, %v2502
    %v2581 = vpack.c.b16 %v2507, %v2505
    %v2582 = vpack.c.b16 %v2508, %v2506
    %v2583 = vpack.c.b16 %v2511, %v2509
    %v2584 = vpack.c.b16 %v2512, %v2510
    %v2585 = vpack.c.b16 %v2515, %v2513
    %v2586 = vpack.c.b16 %v2516, %v2514
    %v2587 = vpack.c.b16 %v2519, %v2517
    %v2588 = vpack.c.b16 %v2520, %v2518
    %v2589 = vpack.c.b16 %v2523, %v2521
    %v2590 = vpack.c.b16 %v2524, %v2522
    %v2591 = vpack.c.b16 %v2527, %v2525
    %v2592 = vpack.c.b16 %v2528, %v2526
    %2657 = vmatpush.bf16.msra.mxu0 %v2543
    %2658 = vmatpush.bf16.msra.mxu0 %v2541
    %2659 = vmatpush.bf16.msra.mxu0 %v2539
    %2660 = vmatpush.bf16.msra.mxu0 %v2537
    %2661 = vmatpush.bf16.msra.mxu0 %v2535
    %2662 = vmatpush.bf16.msra.mxu0 %v2533
    %2663 = vmatpush.bf16.msra.mxu0 %v2531
    %2664 = vmatpush.bf16.msra.mxu0 %v2529
    %2665 = vmatmul.bf16.gmra.mxu0 %v2263
    %v2666 = vpop.f32.mrf.mxu0
    %v2667 = vadd.f32 %v2333, %v2666
    %v2668 = vpop.f32.mrf.mxu0
    %2669 = vdwg.mxu0
    %2670 = vmatpush.bf16.msra.mxu0 %v2559
    %2671 = vmatpush.bf16.msra.mxu0 %v2557
    %2672 = vmatpush.bf16.msra.mxu0 %v2555
    %2673 = vmatpush.bf16.msra.mxu0 %v2553
    %2674 = vmatpush.bf16.msra.mxu0 %v2551
    %2675 = vmatpush.bf16.msra.mxu0 %v2549
    %2676 = vmatpush.bf16.msra.mxu0 %v2547
    %2677 = vmatpush.bf16.msra.mxu0 %v2545
    %2678 = vmatmul.bf16.gmra.mxu0 %v2264
    %v2679 = vpop.f32.mrf.mxu0
    %v2680 = vadd.f32 %v2667, %v2679
    %v2681 = vpop.f32.mrf.mxu0
    %2682 = vdwg.mxu0
    %2683 = vmatpush.bf16.msra.mxu0 %v2575
    %2684 = vmatpush.bf16.msra.mxu0 %v2573
    %2685 = vmatpush.bf16.msra.mxu0 %v2571
    %2686 = vmatpush.bf16.msra.mxu0 %v2569
    %2687 = vmatpush.bf16.msra.mxu0 %v2567
    %2688 = vmatpush.bf16.msra.mxu0 %v2565
    %2689 = vmatpush.bf16.msra.mxu0 %v2563
    %2690 = vmatpush.bf16.msra.mxu0 %v2561
    %2691 = vmatmul.bf16.gmra.mxu0 %v2265
    %v2692 = vpop.f32.mrf.mxu0
    %v2693 = vadd.f32 %v2680, %v2692
    %v2694 = vpop.f32.mrf.mxu0
    %2695 = vdwg.mxu0
    %2696 = vmatpush.bf16.msra.mxu0 %v2591
    %2697 = vmatpush.bf16.msra.mxu0 %v2589
    %2698 = vmatpush.bf16.msra.mxu0 %v2587
    %2699 = vmatpush.bf16.msra.mxu0 %v2585
    %2700 = vmatpush.bf16.msra.mxu0 %v2583
    %2701 = vmatpush.bf16.msra.mxu0 %v2581
    %2702 = vmatpush.bf16.msra.mxu0 %v2579
    %2703 = vmatpush.bf16.msra.mxu0 %v2577
    %2704 = vmatmul.bf16.gmra.mxu0 %v2266
    %v2705 = vpop.f32.mrf.mxu0
    %v2706 = vadd.f32 %v2693, %v2705
    %v2707 = vpop.f32.mrf.mxu0
    %2708 = vdwg.mxu0
    %2709 = vmatpush.bf16.msra.mxu0 %v2544
    %2710 = vmatpush.bf16.msra.mxu0 %v2542
    %2711 = vmatpush.bf16.msra.mxu0 %v2540
    %2712 = vmatpush.bf16.msra.mxu0 %v2538
    %2713 = vmatpush.bf16.msra.mxu0 %v2536
    %2714 = vmatpush.bf16.msra.mxu0 %v2534
    %2715 = vmatpush.bf16.msra.mxu0 %v2532
    %2716 = vmatpush.bf16.msra.mxu0 %v2530
    %2717 = vmatmul.bf16.gmra.mxu0 %v2263
    %v2718 = vpop.f32.mrf.mxu0
    %v2719 = vadd.f32 %v2334, %v2718
    %v2720 = vpop.f32.mrf.mxu0
    %2721 = vdwg.mxu0
    %2722 = vmatpush.bf16.msra.mxu0 %v2560
    %2723 = vmatpush.bf16.msra.mxu0 %v2558
    %2724 = vmatpush.bf16.msra.mxu0 %v2556
    %2725 = vmatpush.bf16.msra.mxu0 %v2554
    %2726 = vmatpush.bf16.msra.mxu0 %v2552
    %2727 = vmatpush.bf16.msra.mxu0 %v2550
    %2728 = vmatpush.bf16.msra.mxu0 %v2548
    %2729 = vmatpush.bf16.msra.mxu0 %v2546
    %2730 = vmatmul.bf16.gmra.mxu0 %v2264
    %v2731 = vpop.f32.mrf.mxu0
    %v2732 = vadd.f32 %v2719, %v2731
    %v2733 = vpop.f32.mrf.mxu0
    %2734 = vdwg.mxu0
    %2735 = vmatpush.bf16.msra.mxu0 %v2576
    %2736 = vmatpush.bf16.msra.mxu0 %v2574
    %2737 = vmatpush.bf16.msra.mxu0 %v2572
    %2738 = vmatpush.bf16.msra.mxu0 %v2570
    %2739 = vmatpush.bf16.msra.mxu0 %v2568
    %2740 = vmatpush.bf16.msra.mxu0 %v2566
    %2741 = vmatpush.bf16.msra.mxu0 %v2564
    %2742 = vmatpush.bf16.msra.mxu0 %v2562
    %2743 = vmatmul.bf16.gmra.mxu0 %v2265
    %v2744 = vpop.f32.mrf.mxu0
    %v2745 = vadd.f32 %v2732, %v2744
    %v2746 = vpop.f32.mrf.mxu0
    %2747 = vdwg.mxu0
    %2748 = vmatpush.bf16.msra.mxu0 %v2592
    %2749 = vmatpush.bf16.msra.mxu0 %v2590
    %2750 = vmatpush.bf16.msra.mxu0 %v2588
    %2751 = vmatpush.bf16.msra.mxu0 %v2586
    %2752 = vmatpush.bf16.msra.mxu0 %v2584
    %2753 = vmatpush.bf16.msra.mxu0 %v2582
    %2754 = vmatpush.bf16.msra.mxu0 %v2580
    %2755 = vmatpush.bf16.msra.mxu0 %v2578
    %2756 = vmatmul.bf16.gmra.mxu0 %v2266
    %v2757 = vpop.f32.mrf.mxu0
    %v2758 = vadd.f32 %v2745, %v2757
    %v2759 = vpop.f32.mrf.mxu0
    %2760 = vdwg.mxu0
    %2761 = vst [vmem:[#allocation17] sm:$0xff] %v2706
    %v2762 = vld [vmem:[#allocation5] sm:$0xff]
    %v2763 = vld [vmem:[#allocation7] sm:$0xff]
    %v2764 = vld [vmem:[#allocation7 + $0x8] sm:$0xff]
    %vm2765 = vcmask 130048
    %v2767 = vsel %vm2765, %v2762, 0
    %2769 = vmatpush.msra.mxu0 0.0
    %2770 = vmatpush.msra.mxu0 0.0
    %2771 = vmatpush.msra.mxu0 0.0
    %2772 = vmatpush.msra.mxu0 0.0
    %2773 = vmatpush.msra.mxu0 0.0
    %2774 = vmatpush.msra.mxu0 0.0
    %2775 = vmatpush.msra.mxu0 0.0
    %2776 = vmatpush.msra.mxu0 0.0
    %2777 = vmatpush.msra.mxu0 0.0
    %2778 = vmatpush.msra.mxu0 0.0
    %2779 = vmatpush.msra.mxu0 0.0
    %2780 = vmatpush.msra.mxu0 0.0
    %2781 = vmatpush.msra.mxu0 0.0
    %2782 = vmatpush.msra.mxu0 0.0
    %2783 = vmatpush.msra.mxu0 %v2764
    %2784 = vmatpush.msra.mxu0 %v2763
    %2785 = vmatmul.f32.gmra.mxu0 %v2767
    %v2786 = vpop.f32.mrf.mxu0
    %v2787 = vadd.f32 0.0, %v2786
    %2788 = vdwg.mxu0
    %v2789 = vmul.f32 %v2706, %v2787
    %v2790 = vld [vmem:[#allocation8] sm:$0xff]
    %v2791 = vld [vmem:[#allocation8 + $0x8] sm:$0xff]
    %v2792 = vld [vmem:[#allocation8 + $0x10] sm:$0xff]
    %v2793 = vld [vmem:[#allocation8 + $0x18] sm:$0xff]
    %v2794 = vld [vmem:[#allocation8 + $0x20] sm:$0xff]
    %v2795 = vld [vmem:[#allocation8 + $0x28] sm:$0xff]
    %v2796 = vld [vmem:[#allocation8 + $0x30] sm:$0xff]
    %v2797 = vld [vmem:[#allocation8 + $0x38] sm:$0xff]
    %v2798 = vld [vmem:[#allocation8 + $0x40] sm:$0xff]
    %v2799 = vld [vmem:[#allocation8 + $0x48] sm:$0xff]
    %v2800 = vld [vmem:[#allocation8 + $0x50] sm:$0xff]
    %v2801 = vld [vmem:[#allocation8 + $0x58] sm:$0xff]
    %v2802 = vld [vmem:[#allocation8 + $0x60] sm:$0xff]
    %v2803 = vld [vmem:[#allocation8 + $0x68] sm:$0xff]
    %v2804 = vld [vmem:[#allocation8 + $0x70] sm:$0xff]
    %v2805 = vld [vmem:[#allocation8 + $0x78] sm:$0xff]
    %2806 = vmatpush.msra.mxu0 %v2805
    %2807 = vmatpush.msra.mxu0 %v2804
    %2808 = vmatpush.msra.mxu0 %v2803
    %2809 = vmatpush.msra.mxu0 %v2802
    %2810 = vmatpush.msra.mxu0 %v2801
    %2811 = vmatpush.msra.mxu0 %v2800
    %2812 = vmatpush.msra.mxu0 %v2799
    %2813 = vmatpush.msra.mxu0 %v2798
    %2814 = vmatpush.msra.mxu0 %v2797
    %2815 = vmatpush.msra.mxu0 %v2796
    %2816 = vmatpush.msra.mxu0 %v2795
    %2817 = vmatpush.msra.mxu0 %v2794
    %2818 = vmatpush.msra.mxu0 %v2793
    %2819 = vmatpush.msra.mxu0 %v2792
    %2820 = vmatpush.msra.mxu0 %v2791
    %2821 = vmatpush.msra.mxu0 %v2790
    %2822 = vmatmul.f32.gmra.mxu0 %v2789
    %v2823 = vpop.f32.mrf.mxu0
    %v2824 = vadd.f32 %v2758, %v2823
    %2825 = vdwg.mxu0
    %2826 = vst [vmem:[#allocation18] sm:$0xff] %v2824
    // Predicated region
    $region86: #{tpu_custom_call.1} parent=1 // pred_check
      _
    $region87: #{tpu_custom_call.1} parent=1 // pred_check_branch
      %2828 = sbr.rel (0) target = $region89
    $region88: #{tpu_custom_call.1} parent=1 // pred_region
      %2830 = vsyncadd [#allocation4], 0
      %s2832 = sshll.u32 [#allocation17], 4
      %s2833 = int_to_ptr.vmem [resolvable:$true] %s2832
      %s2834 = sshll.u32 %s12, 4
      %s2835 = int_to_ptr.hbm [resolvable:$true] %s2834
      %2837 = dma.vmem_to_hbm [thread:$0]  %s2833, 128, %s2835, [#allocation4]
    $region89: #{tpu_custom_call.1} parent=1 // pred_fallthru
      _
    // Predicated region
    $region90: #{tpu_custom_call.1} parent=1 // pred_check
      _
    $region91: #{tpu_custom_call.1} parent=1 // pred_check_branch
      %2839 = sbr.rel (0) target = $region93
    $region92: #{tpu_custom_call.1} parent=1 // pred_region
      %2841 = vsyncadd [#allocation19], 0
      %s2843 = sshll.u32 [#allocation18], 4
      %s2844 = int_to_ptr.vmem [resolvable:$true] %s2843
      %s2845 = sshll.u32 %s13, 4
      %s2846 = int_to_ptr.hbm [resolvable:$true] %s2845
      %2848 = dma.vmem_to_hbm [thread:$0]  %s2844, 128, %s2846, [#allocation19]
    $region93: #{tpu_custom_call.1} parent=1 // pred_fallthru
      _
    // Predicated region
    $region94: #{tpu_custom_call.1} parent=1 // pred_check
      _
    $region95: #{tpu_custom_call.1} parent=1 // pred_check_branch
      %2850 = sbr.rel (0) target = $region97
    $region96: #{tpu_custom_call.1} parent=1 // pred_region
      %2852 = dma.done [#allocation4], 128
    $region97: #{tpu_custom_call.1} parent=1 // pred_fallthru
      _
    // Predicated region
    $region98: #{tpu_custom_call.1} parent=1 // pred_check
      _
    $region99: #{tpu_custom_call.1} parent=1 // pred_check_branch
      %2854 = sbr.rel (0) target = $region101
    $region100: #{tpu_custom_call.1} parent=1 // pred_region
      %2856 = dma.done [#allocation19], 128
    $region101: #{tpu_custom_call.1} parent=1 // pred_fallthru
      _
    %2857 = vsyncpa [#allocation3], 1
    %2858 = vsyncpa [#allocation6], 1
    %2859 = vsyncpa [#allocation9], 1
    %2860 = vsyncpa [#allocation12], 1
    %2861 = vsyncpa [#allocation15], 1
    %2862 = vsyncpa [#allocation4], 1
    %2863 = vsyncpa [#allocation19], 1

</llo_original>
